<compile_context>
chip_gen: v7x
topology: tpu7x:2x2x1
jax: 0.10.0
libtpu: 0.0.40
codegen_flags: <defaults>
</compile_context>

<pallas_src>
import functools
import math

import jax
import jax.numpy as jnp
import numpy as np
from jax.experimental import pallas as pl
from jax.experimental.pallas import tpu as pltpu

EPS = 1e-5        # nn.LayerNorm default eps
NEG_INF = -1e30   # additive mask for cross-batch attention pairs


def transformer_block_kernel(x_ref, bias_ref,
                             ln1_w_ref, ln1_b_ref,
                             wqkv_ref, bqkv_ref,
                             wo_ref, bo_ref,
                             ln2_w_ref, ln2_b_ref,
                             w1_ref, b1_ref,
                             w2_ref, b2_ref,
                             o_ref,
                             attn_ref,
                             *, num_heads):
    x = x_ref[...]                         # (N, E) f32, N = S*B flattened rows
    N, E = x.shape
    D = E // num_heads

    def matmul(a_f32, w_ref):
        # bf16 operands on the MXU, f32 accumulation.
        return jnp.dot(a_f32.astype(jnp.bfloat16), w_ref[...],
                       preferred_element_type=jnp.float32)

    # --- LayerNorm 1 (f32 elementwise math) ---
    mu = jnp.mean(x, axis=-1, keepdims=True)
    var = jnp.mean((x - mu) ** 2, axis=-1, keepdims=True)
    xn = (x - mu) * jax.lax.rsqrt(var + EPS) * ln1_w_ref[...] + ln1_b_ref[...]

    # --- packed QKV projection (1/sqrt(D) already folded into the Q columns) ---
    qkv = matmul(xn, wqkv_ref) + bqkv_ref[...]
    q = qkv[:, 0 * E:1 * E]
    k = qkv[:, 1 * E:2 * E]
    v = qkv[:, 2 * E:3 * E]

    bias = bias_ref[...]                   # (N, N): 0 for same-batch pairs, -1e30 otherwise

    # --- scaled dot-product attention over all rows, cross-batch masked ---
    # Head outputs go into a VMEM scratch slab instead of a jnp.concatenate.
    for h in range(num_heads):
        qh = q[:, h * D:(h + 1) * D].astype(jnp.bfloat16)
        kh = k[:, h * D:(h + 1) * D].astype(jnp.bfloat16)
        vh = v[:, h * D:(h + 1) * D].astype(jnp.bfloat16)
        s = jax.lax.dot_general(qh, kh, (((1,), (1,)), ((), ())),
                                preferred_element_type=jnp.float32) + bias
        m = jnp.max(s, axis=-1, keepdims=True)
        p = jnp.exp(s - m)
        inv = pl.reciprocal(jnp.sum(p, axis=-1, keepdims=True), approx=True)
        p = p * inv
        oh = jnp.dot(p.astype(jnp.bfloat16), vh, preferred_element_type=jnp.float32)
        attn_ref[:, h * D:(h + 1) * D] = oh

    # --- attention output projection ---
    a = matmul(attn_ref[...], wo_ref) + bo_ref[...]

    # --- LayerNorm 2 ---
    mu2 = jnp.mean(a, axis=-1, keepdims=True)
    var2 = jnp.mean((a - mu2) ** 2, axis=-1, keepdims=True)
    an = (a - mu2) * jax.lax.rsqrt(var2 + EPS) * ln2_w_ref[...] + ln2_b_ref[...]

    # --- feed-forward: Linear -> ReLU -> Linear ---
    hdn = jnp.maximum(matmul(an, w1_ref) + b1_ref[...], 0.0)
    y = matmul(hdn, w2_ref) + b2_ref[...]

    o_ref[...] = y.astype(o_ref.dtype)


def transformer_block(x_sbe, params, num_heads):
    """x_sbe: (S, B, E) float32 — PyTorch (seq, batch, embed) convention."""
    S, B, E = x_sbe.shape
    N = S * B
    Fh = params["w1_bf"].shape[1]

    # Free reshape (contiguous, no transpose): row r of x2 is token (s=r//B, b=r%B).
    x2 = x_sbe.reshape(N, E)

    # Additive attention bias: 0 where query/key rows belong to the same batch element,
    # -1e30 otherwise, so one (N, N) score matrix per head handles the whole batch.
    rb = jnp.arange(N, dtype=jnp.int32) % B
    attn_bias = jnp.where(rb[:, None] == rb[None, :], 0.0, NEG_INF).astype(jnp.float32)

    def full(shape):
        return pl.BlockSpec(shape, lambda i: (0, 0))

    in_specs = [
        full((N, E)),                      # x2
        full((N, N)),                      # cross-batch mask bias
        full((1, E)), full((1, E)),        # ln1 weight / bias
        full((E, 3 * E)), full((1, 3 * E)),  # in_proj W^T (bf16, Q pre-scaled) / bias
        full((E, E)), full((1, E)),        # out_proj W^T (bf16) / bias
        full((1, E)), full((1, E)),        # ln2 weight / bias
        full((E, Fh)), full((1, Fh)),      # ff1 W^T (bf16) / bias
        full((Fh, E)), full((1, E)),       # ff2 W^T (bf16) / bias
    ]

    out = pl.pallas_call(
        functools.partial(transformer_block_kernel, num_heads=num_heads),
        grid=(1,),
        in_specs=in_specs,
        out_specs=full((N, E)),
        out_shape=jax.ShapeDtypeStruct((N, E), jnp.float32),
        scratch_shapes=[pltpu.VMEM((N, E), jnp.float32)],
        compiler_params=pltpu.CompilerParams(
            dimension_semantics=("arbitrary",),
            vmem_limit_bytes=48 * 1024 * 1024),
    )(x2, attn_bias,
      params["ln1_w"], params["ln1_b"],
      params["wqkv_bf"], params["bqkv"],
      params["wo_bf"], params["bo"],
      params["ln2_w"], params["ln2_b"],
      params["w1_bf"], params["b1"],
      params["w2_bf"], params["b2"])

    return out.reshape(S, B, E)            # free reshape back to (S, B, E)


def reference_block(x_sbe, params, num_heads):
    """Pure-JAX reference mirroring the PyTorch forward (for verification)."""
    S, B, E = x_sbe.shape
    D = E // num_heads
    wqkv = params["wqkv_bf"].astype(jnp.float32)   # same bf16-rounded weights as the kernel
    wo = params["wo_bf"].astype(jnp.float32)
    w1 = params["w1_bf"].astype(jnp.float32)
    w2 = params["w2_bf"].astype(jnp.float32)

    x = x_sbe
    mu = jnp.mean(x, -1, keepdims=True)
    var = jnp.mean((x - mu) ** 2, -1, keepdims=True)
    xn = (x - mu) / jnp.sqrt(var + EPS) * params["ln1_w"][0] + params["ln1_b"][0]
    qkv = xn @ wqkv + params["bqkv"][0]
    q, k, v = qkv[..., :E], qkv[..., E:2 * E], qkv[..., 2 * E:]

    def split(t):  # (S, B, E) -> (B, H, S, D)
        return jnp.transpose(t.reshape(S, B, num_heads, D), (1, 2, 0, 3))

    qh, kh, vh = split(q), split(k), split(v)
    s = jnp.einsum("bhqd,bhkd->bhqk", qh, kh)      # 1/sqrt(D) already folded into wqkv
    p = jax.nn.softmax(s, axis=-1)
    o = jnp.einsum("bhqk,bhkd->bhqd", p, vh)
    o = jnp.transpose(o, (2, 0, 1, 3)).reshape(S, B, E)
    a = o @ wo + params["bo"][0]
    mu2 = jnp.mean(a, -1, keepdims=True)
    var2 = jnp.mean((a - mu2) ** 2, -1, keepdims=True)
    an = (a - mu2) / jnp.sqrt(var2 + EPS) * params["ln2_w"][0] + params["ln2_b"][0]
    h = jnp.maximum(an @ w1 + params["b1"][0], 0.0)
    return h @ w2 + params["b2"][0]


def make_params(key, E, Fh, num_heads):
    D = E // num_heads
    ks = jax.random.split(key, 8)
    scale = 0.05
    qscale = 1.0 / math.sqrt(D)

    wqkv = scale * jax.random.normal(ks[0], (E, 3 * E), jnp.float32)
    bqkv = scale * jax.random.normal(ks[1], (1, 3 * E), jnp.float32)
    # Fold the 1/sqrt(head_dim) attention scale into the Q projection (one-time, host side).
    wqkv = wqkv.at[:, :E].multiply(qscale)
    bqkv = bqkv.at[:, :E].multiply(qscale)

    return {
        "ln1_w": jnp.ones((1, E), jnp.float32),
        "ln1_b": jnp.zeros((1, E), jnp.float32),
        "wqkv_bf": wqkv.astype(jnp.bfloat16),   # (E, 3E) == in_proj_weight.T, Q pre-scaled
        "bqkv": bqkv,
        "wo_bf": (scale * jax.random.normal(ks[2], (E, E), jnp.float32)).astype(jnp.bfloat16),
        "bo": scale * jax.random.normal(ks[3], (1, E), jnp.float32),
        "ln2_w": jnp.ones((1, E), jnp.float32),
        "ln2_b": jnp.zeros((1, E), jnp.float32),
        "w1_bf": (scale * jax.random.normal(ks[4], (E, Fh), jnp.float32)).astype(jnp.bfloat16),
        "b1": scale * jax.random.normal(ks[5], (1, Fh), jnp.float32),
        "w2_bf": (scale * jax.random.normal(ks[6], (Fh, E), jnp.float32)).astype(jnp.bfloat16),
        "b2": scale * jax.random.normal(ks[7], (1, E), jnp.float32),
    }


if __name__ == "__main__":
    S, B, E = 8, 2, 32          # seq_len, batch, channel_size
    H = 4                       # num_heads
    Fh = 64                     # dim_feedforward (small, in place of 2048)

    key = jax.random.PRNGKey(0)
    kx, kp = jax.random.split(key)
    x = jax.random.normal(kx, (S, B, E), jnp.float32)
    params = make_params(kp, E, Fh, H)

    y = jax.block_until_ready(transformer_block(x, params, num_heads=H))
    y_ref = jax.block_until_ready(reference_block(x, params, num_heads=H))

    # Tolerance covers bf16 matmul operands and the approx softmax reciprocal.
    np.testing.assert_allclose(np.asarray(y), np.asarray(y_ref), rtol=2e-2, atol=2e-2)

    print("KERNEL_OK")
</pallas_src>

<mosaic_0001>
module attributes {stable_mosaic.version = 11 : i64} {
  func.func @transformer_block_kernel(%arg0: i32, %arg1: memref<16x32xf32, #tpu.memory_space<vmem>>, %arg2: memref<16x16xf32, #tpu.memory_space<vmem>>, %arg3: memref<1x32xf32, #tpu.memory_space<vmem>>, %arg4: memref<1x32xf32, #tpu.memory_space<vmem>>, %arg5: memref<32x96xbf16, #tpu.memory_space<vmem>>, %arg6: memref<1x96xf32, #tpu.memory_space<vmem>>, %arg7: memref<32x32xbf16, #tpu.memory_space<vmem>>, %arg8: memref<1x32xf32, #tpu.memory_space<vmem>>, %arg9: memref<1x32xf32, #tpu.memory_space<vmem>>, %arg10: memref<1x32xf32, #tpu.memory_space<vmem>>, %arg11: memref<32x64xbf16, #tpu.memory_space<vmem>>, %arg12: memref<1x64xf32, #tpu.memory_space<vmem>>, %arg13: memref<64x32xbf16, #tpu.memory_space<vmem>>, %arg14: memref<1x32xf32, #tpu.memory_space<vmem>>, %arg15: memref<16x32xf32, #tpu.memory_space<vmem>>, %arg16: memref<16x32xf32, #tpu.memory_space<vmem>>) attributes {dimension_semantics = [#tpu.dimension_semantics<arbitrary>], iteration_bounds = array<i64: 1>, scalar_prefetch = 0 : i64, scratch_operands = 1 : i64, tpu.core_type = #tpu.core_type<tc>, window_params = [{pipeline_mode = #tpu.pipeline_mode<synchronous>, transform_indices = @transform_0, window_bounds = array<i64: 16, 32>}, {pipeline_mode = #tpu.pipeline_mode<synchronous>, transform_indices = @transform_1, window_bounds = array<i64: 16, 16>}, {pipeline_mode = #tpu.pipeline_mode<synchronous>, transform_indices = @transform_2, window_bounds = array<i64: 1, 32>}, {pipeline_mode = #tpu.pipeline_mode<synchronous>, transform_indices = @transform_3, window_bounds = array<i64: 1, 32>}, {pipeline_mode = #tpu.pipeline_mode<synchronous>, transform_indices = @transform_4, window_bounds = array<i64: 32, 96>}, {pipeline_mode = #tpu.pipeline_mode<synchronous>, transform_indices = @transform_5, window_bounds = array<i64: 1, 96>}, {pipeline_mode = #tpu.pipeline_mode<synchronous>, transform_indices = @transform_6, window_bounds = array<i64: 32, 32>}, {pipeline_mode = #tpu.pipeline_mode<synchronous>, transform_indices = @transform_7, window_bounds = array<i64: 1, 32>}, {pipeline_mode = #tpu.pipeline_mode<synchronous>, transform_indices = @transform_8, window_bounds = array<i64: 1, 32>}, {pipeline_mode = #tpu.pipeline_mode<synchronous>, transform_indices = @transform_9, window_bounds = array<i64: 1, 32>}, {pipeline_mode = #tpu.pipeline_mode<synchronous>, transform_indices = @transform_10, window_bounds = array<i64: 32, 64>}, {pipeline_mode = #tpu.pipeline_mode<synchronous>, transform_indices = @transform_11, window_bounds = array<i64: 1, 64>}, {pipeline_mode = #tpu.pipeline_mode<synchronous>, transform_indices = @transform_12, window_bounds = array<i64: 64, 32>}, {pipeline_mode = #tpu.pipeline_mode<synchronous>, transform_indices = @transform_13, window_bounds = array<i64: 1, 32>}, {pipeline_mode = #tpu.pipeline_mode<synchronous>, transform_indices = @transform_14, window_bounds = array<i64: 16, 32>}]} {
    %c0 = arith.constant 0 : index
    %c0_0 = arith.constant 0 : index
    %0 = vector.load %arg1[%c0, %c0_0] : memref<16x32xf32, #tpu.memory_space<vmem>>, vector<16x32xf32>
    %cst = arith.constant dense<0.000000e+00> : vector<16xf32>
    %1 = vector.multi_reduction <add>, %0, %cst [1] : vector<16x32xf32> to vector<16xf32>
    %2 = vector.shape_cast %1 : vector<16xf32> to vector<16x1xf32>
    %cst_1 = arith.constant 3.200000e+01 : f32
    %3 = vector.broadcast %cst_1 : f32 to vector<16x1xf32>
    %4 = arith.divf %2, %3 : vector<16x1xf32>
    %5 = vector.broadcast %4 : vector<16x1xf32> to vector<16x32xf32>
    %6 = arith.subf %0, %5 : vector<16x32xf32>
    %7 = arith.mulf %6, %6 : vector<16x32xf32>
    %cst_2 = arith.constant dense<0.000000e+00> : vector<16xf32>
    %8 = vector.multi_reduction <add>, %7, %cst_2 [1] : vector<16x32xf32> to vector<16xf32>
    %9 = vector.shape_cast %8 : vector<16xf32> to vector<16x1xf32>
    %cst_3 = arith.constant 3.200000e+01 : f32
    %10 = vector.broadcast %cst_3 : f32 to vector<16x1xf32>
    %11 = arith.divf %9, %10 : vector<16x1xf32>
    %12 = vector.broadcast %4 : vector<16x1xf32> to vector<16x32xf32>
    %13 = arith.subf %0, %12 : vector<16x32xf32>
    %cst_4 = arith.constant 9.99999974E-6 : f32
    %14 = vector.broadcast %cst_4 : f32 to vector<16x1xf32>
    %15 = arith.addf %11, %14 : vector<16x1xf32>
    %16 = math.rsqrt %15 : vector<16x1xf32>
    %17 = vector.broadcast %16 : vector<16x1xf32> to vector<16x32xf32>
    %18 = arith.mulf %13, %17 : vector<16x32xf32>
    %c0_5 = arith.constant 0 : index
    %c0_6 = arith.constant 0 : index
    %19 = vector.load %arg3[%c0_5, %c0_6] : memref<1x32xf32, #tpu.memory_space<vmem>>, vector<1x32xf32>
    %20 = vector.broadcast %19 : vector<1x32xf32> to vector<16x32xf32>
    %21 = arith.mulf %18, %20 : vector<16x32xf32>
    %c0_7 = arith.constant 0 : index
    %c0_8 = arith.constant 0 : index
    %22 = vector.load %arg4[%c0_7, %c0_8] : memref<1x32xf32, #tpu.memory_space<vmem>>, vector<1x32xf32>
    %23 = vector.broadcast %22 : vector<1x32xf32> to vector<16x32xf32>
    %24 = arith.addf %21, %23 : vector<16x32xf32>
    %25 = arith.truncf %24 : vector<16x32xf32> to vector<16x32xbf16>
    %c0_9 = arith.constant 0 : index
    %c0_10 = arith.constant 0 : index
    %26 = vector.load %arg5[%c0_9, %c0_10] : memref<32x96xbf16, #tpu.memory_space<vmem>>, vector<32x96xbf16>
    %cst_11 = arith.constant dense<0.000000e+00> : vector<16x96xf32>
    %27 = tpu.matmul %25, %26, %cst_11 {dimension_numbers = #tpu.dot_dimension_numbers<[1], [0], [0], [1], [0, 0, 1, 1], [], []>} : vector<16x32xbf16>, vector<32x96xbf16>, vector<16x96xf32> -> vector<16x96xf32>
    %c0_12 = arith.constant 0 : index
    %c0_13 = arith.constant 0 : index
    %28 = vector.load %arg6[%c0_12, %c0_13] : memref<1x96xf32, #tpu.memory_space<vmem>>, vector<1x96xf32>
    %29 = vector.broadcast %28 : vector<1x96xf32> to vector<16x96xf32>
    %30 = arith.addf %27, %29 : vector<16x96xf32>
    %31 = vector.extract_strided_slice %30 {offsets = [0, 0], sizes = [16, 32], strides = [1, 1]} : vector<16x96xf32> to vector<16x32xf32>
    %32 = vector.extract_strided_slice %30 {offsets = [0, 32], sizes = [16, 32], strides = [1, 1]} : vector<16x96xf32> to vector<16x32xf32>
    %33 = vector.extract_strided_slice %30 {offsets = [0, 64], sizes = [16, 32], strides = [1, 1]} : vector<16x96xf32> to vector<16x32xf32>
    %c0_14 = arith.constant 0 : index
    %c0_15 = arith.constant 0 : index
    %34 = vector.load %arg2[%c0_14, %c0_15] : memref<16x16xf32, #tpu.memory_space<vmem>>, vector<16x16xf32>
    %35 = vector.extract_strided_slice %31 {offsets = [0, 0], sizes = [16, 8], strides = [1, 1]} : vector<16x32xf32> to vector<16x8xf32>
    %36 = arith.truncf %35 : vector<16x8xf32> to vector<16x8xbf16>
    %37 = vector.extract_strided_slice %32 {offsets = [0, 0], sizes = [16, 8], strides = [1, 1]} : vector<16x32xf32> to vector<16x8xf32>
    %38 = arith.truncf %37 : vector<16x8xf32> to vector<16x8xbf16>
    %39 = vector.extract_strided_slice %33 {offsets = [0, 0], sizes = [16, 8], strides = [1, 1]} : vector<16x32xf32> to vector<16x8xf32>
    %40 = arith.truncf %39 : vector<16x8xf32> to vector<16x8xbf16>
    %cst_16 = arith.constant dense<0.000000e+00> : vector<16x16xf32>
    %41 = tpu.matmul %36, %38, %cst_16 {dimension_numbers = #tpu.dot_dimension_numbers<[1], [1], [0], [0], [0, 0, 1, 0], [], []>} : vector<16x8xbf16>, vector<16x8xbf16>, vector<16x16xf32> -> vector<16x16xf32>
    %42 = arith.addf %41, %34 : vector<16x16xf32>
    %cst_17 = arith.constant dense<0xFF800000> : vector<16xf32>
    %43 = vector.multi_reduction <maximumf>, %42, %cst_17 [1] : vector<16x16xf32> to vector<16xf32>
    %44 = vector.shape_cast %43 : vector<16xf32> to vector<16x1xf32>
    %45 = vector.broadcast %44 : vector<16x1xf32> to vector<16x16xf32>
    %46 = arith.subf %42, %45 : vector<16x16xf32>
    %47 = math.exp %46 : vector<16x16xf32>
    %cst_18 = arith.constant dense<0.000000e+00> : vector<16xf32>
    %48 = vector.multi_reduction <add>, %47, %cst_18 [1] : vector<16x16xf32> to vector<16xf32>
    %49 = vector.shape_cast %48 : vector<16xf32> to vector<16x1xf32>
    %50 = tpu.reciprocal %49 {approx = true} : vector<16x1xf32> -> vector<16x1xf32>
    %51 = vector.broadcast %50 : vector<16x1xf32> to vector<16x16xf32>
    %52 = arith.mulf %47, %51 : vector<16x16xf32>
    %53 = arith.truncf %52 : vector<16x16xf32> to vector<16x16xbf16>
    %cst_19 = arith.constant dense<0.000000e+00> : vector<16x8xf32>
    %54 = tpu.matmul %53, %40, %cst_19 {dimension_numbers = #tpu.dot_dimension_numbers<[1], [0], [0], [1], [0, 0, 1, 1], [], []>} : vector<16x16xbf16>, vector<16x8xbf16>, vector<16x8xf32> -> vector<16x8xf32>
    %c0_20 = arith.constant 0 : index
    %c0_21 = arith.constant 0 : index
    %55 = vector.load %arg16[%c0_20, %c0_21] : memref<16x32xf32, #tpu.memory_space<vmem>>, vector<16x8xf32>
    tpu.vector_store %arg16[%c0_20, %c0_21], %54 {strides = array<i32>} : memref<16x32xf32, #tpu.memory_space<vmem>>, vector<16x8xf32>,
    %56 = vector.extract_strided_slice %31 {offsets = [0, 8], sizes = [16, 8], strides = [1, 1]} : vector<16x32xf32> to vector<16x8xf32>
    %57 = arith.truncf %56 : vector<16x8xf32> to vector<16x8xbf16>
    %58 = vector.extract_strided_slice %32 {offsets = [0, 8], sizes = [16, 8], strides = [1, 1]} : vector<16x32xf32> to vector<16x8xf32>
    %59 = arith.truncf %58 : vector<16x8xf32> to vector<16x8xbf16>
    %60 = vector.extract_strided_slice %33 {offsets = [0, 8], sizes = [16, 8], strides = [1, 1]} : vector<16x32xf32> to vector<16x8xf32>
    %61 = arith.truncf %60 : vector<16x8xf32> to vector<16x8xbf16>
    %cst_22 = arith.constant dense<0.000000e+00> : vector<16x16xf32>
    %62 = tpu.matmul %57, %59, %cst_22 {dimension_numbers = #tpu.dot_dimension_numbers<[1], [1], [0], [0], [0, 0, 1, 0], [], []>} : vector<16x8xbf16>, vector<16x8xbf16>, vector<16x16xf32> -> vector<16x16xf32>
    %63 = arith.addf %62, %34 : vector<16x16xf32>
    %cst_23 = arith.constant dense<0xFF800000> : vector<16xf32>
    %64 = vector.multi_reduction <maximumf>, %63, %cst_23 [1] : vector<16x16xf32> to vector<16xf32>
    %65 = vector.shape_cast %64 : vector<16xf32> to vector<16x1xf32>
    %66 = vector.broadcast %65 : vector<16x1xf32> to vector<16x16xf32>
    %67 = arith.subf %63, %66 : vector<16x16xf32>
    %68 = math.exp %67 : vector<16x16xf32>
    %cst_24 = arith.constant dense<0.000000e+00> : vector<16xf32>
    %69 = vector.multi_reduction <add>, %68, %cst_24 [1] : vector<16x16xf32> to vector<16xf32>
    %70 = vector.shape_cast %69 : vector<16xf32> to vector<16x1xf32>
    %71 = tpu.reciprocal %70 {approx = true} : vector<16x1xf32> -> vector<16x1xf32>
    %72 = vector.broadcast %71 : vector<16x1xf32> to vector<16x16xf32>
    %73 = arith.mulf %68, %72 : vector<16x16xf32>
    %74 = arith.truncf %73 : vector<16x16xf32> to vector<16x16xbf16>
    %cst_25 = arith.constant dense<0.000000e+00> : vector<16x8xf32>
    %75 = tpu.matmul %74, %61, %cst_25 {dimension_numbers = #tpu.dot_dimension_numbers<[1], [0], [0], [1], [0, 0, 1, 1], [], []>} : vector<16x16xbf16>, vector<16x8xbf16>, vector<16x8xf32> -> vector<16x8xf32>
    %c0_26 = arith.constant 0 : index
    %c8 = arith.constant 8 : index
    %76 = vector.load %arg16[%c0_26, %c8] : memref<16x32xf32, #tpu.memory_space<vmem>>, vector<16x8xf32>
    tpu.vector_store %arg16[%c0_26, %c8], %75 {strides = array<i32>} : memref<16x32xf32, #tpu.memory_space<vmem>>, vector<16x8xf32>,
    %77 = vector.extract_strided_slice %31 {offsets = [0, 16], sizes = [16, 8], strides = [1, 1]} : vector<16x32xf32> to vector<16x8xf32>
    %78 = arith.truncf %77 : vector<16x8xf32> to vector<16x8xbf16>
    %79 = vector.extract_strided_slice %32 {offsets = [0, 16], sizes = [16, 8], strides = [1, 1]} : vector<16x32xf32> to vector<16x8xf32>
    %80 = arith.truncf %79 : vector<16x8xf32> to vector<16x8xbf16>
    %81 = vector.extract_strided_slice %33 {offsets = [0, 16], sizes = [16, 8], strides = [1, 1]} : vector<16x32xf32> to vector<16x8xf32>
    %82 = arith.truncf %81 : vector<16x8xf32> to vector<16x8xbf16>
    %cst_27 = arith.constant dense<0.000000e+00> : vector<16x16xf32>
    %83 = tpu.matmul %78, %80, %cst_27 {dimension_numbers = #tpu.dot_dimension_numbers<[1], [1], [0], [0], [0, 0, 1, 0], [], []>} : vector<16x8xbf16>, vector<16x8xbf16>, vector<16x16xf32> -> vector<16x16xf32>
    %84 = arith.addf %83, %34 : vector<16x16xf32>
    %cst_28 = arith.constant dense<0xFF800000> : vector<16xf32>
    %85 = vector.multi_reduction <maximumf>, %84, %cst_28 [1] : vector<16x16xf32> to vector<16xf32>
    %86 = vector.shape_cast %85 : vector<16xf32> to vector<16x1xf32>
    %87 = vector.broadcast %86 : vector<16x1xf32> to vector<16x16xf32>
    %88 = arith.subf %84, %87 : vector<16x16xf32>
    %89 = math.exp %88 : vector<16x16xf32>
    %cst_29 = arith.constant dense<0.000000e+00> : vector<16xf32>
    %90 = vector.multi_reduction <add>, %89, %cst_29 [1] : vector<16x16xf32> to vector<16xf32>
    %91 = vector.shape_cast %90 : vector<16xf32> to vector<16x1xf32>
    %92 = tpu.reciprocal %91 {approx = true} : vector<16x1xf32> -> vector<16x1xf32>
    %93 = vector.broadcast %92 : vector<16x1xf32> to vector<16x16xf32>
    %94 = arith.mulf %89, %93 : vector<16x16xf32>
    %95 = arith.truncf %94 : vector<16x16xf32> to vector<16x16xbf16>
    %cst_30 = arith.constant dense<0.000000e+00> : vector<16x8xf32>
    %96 = tpu.matmul %95, %82, %cst_30 {dimension_numbers = #tpu.dot_dimension_numbers<[1], [0], [0], [1], [0, 0, 1, 1], [], []>} : vector<16x16xbf16>, vector<16x8xbf16>, vector<16x8xf32> -> vector<16x8xf32>
    %c0_31 = arith.constant 0 : index
    %c16 = arith.constant 16 : index
    %97 = vector.load %arg16[%c0_31, %c16] : memref<16x32xf32, #tpu.memory_space<vmem>>, vector<16x8xf32>
    tpu.vector_store %arg16[%c0_31, %c16], %96 {strides = array<i32>} : memref<16x32xf32, #tpu.memory_space<vmem>>, vector<16x8xf32>,
    %98 = vector.extract_strided_slice %31 {offsets = [0, 24], sizes = [16, 8], strides = [1, 1]} : vector<16x32xf32> to vector<16x8xf32>
    %99 = arith.truncf %98 : vector<16x8xf32> to vector<16x8xbf16>
    %100 = vector.extract_strided_slice %32 {offsets = [0, 24], sizes = [16, 8], strides = [1, 1]} : vector<16x32xf32> to vector<16x8xf32>
    %101 = arith.truncf %100 : vector<16x8xf32> to vector<16x8xbf16>
    %102 = vector.extract_strided_slice %33 {offsets = [0, 24], sizes = [16, 8], strides = [1, 1]} : vector<16x32xf32> to vector<16x8xf32>
    %103 = arith.truncf %102 : vector<16x8xf32> to vector<16x8xbf16>
    %cst_32 = arith.constant dense<0.000000e+00> : vector<16x16xf32>
    %104 = tpu.matmul %99, %101, %cst_32 {dimension_numbers = #tpu.dot_dimension_numbers<[1], [1], [0], [0], [0, 0, 1, 0], [], []>} : vector<16x8xbf16>, vector<16x8xbf16>, vector<16x16xf32> -> vector<16x16xf32>
    %105 = arith.addf %104, %34 : vector<16x16xf32>
    %cst_33 = arith.constant dense<0xFF800000> : vector<16xf32>
    %106 = vector.multi_reduction <maximumf>, %105, %cst_33 [1] : vector<16x16xf32> to vector<16xf32>
    %107 = vector.shape_cast %106 : vector<16xf32> to vector<16x1xf32>
    %108 = vector.broadcast %107 : vector<16x1xf32> to vector<16x16xf32>
    %109 = arith.subf %105, %108 : vector<16x16xf32>
    %110 = math.exp %109 : vector<16x16xf32>
    %cst_34 = arith.constant dense<0.000000e+00> : vector<16xf32>
    %111 = vector.multi_reduction <add>, %110, %cst_34 [1] : vector<16x16xf32> to vector<16xf32>
    %112 = vector.shape_cast %111 : vector<16xf32> to vector<16x1xf32>
    %113 = tpu.reciprocal %112 {approx = true} : vector<16x1xf32> -> vector<16x1xf32>
    %114 = vector.broadcast %113 : vector<16x1xf32> to vector<16x16xf32>
    %115 = arith.mulf %110, %114 : vector<16x16xf32>
    %116 = arith.truncf %115 : vector<16x16xf32> to vector<16x16xbf16>
    %cst_35 = arith.constant dense<0.000000e+00> : vector<16x8xf32>
    %117 = tpu.matmul %116, %103, %cst_35 {dimension_numbers = #tpu.dot_dimension_numbers<[1], [0], [0], [1], [0, 0, 1, 1], [], []>} : vector<16x16xbf16>, vector<16x8xbf16>, vector<16x8xf32> -> vector<16x8xf32>
    %c0_36 = arith.constant 0 : index
    %c24 = arith.constant 24 : index
    %118 = vector.load %arg16[%c0_36, %c24] : memref<16x32xf32, #tpu.memory_space<vmem>>, vector<16x8xf32>
    tpu.vector_store %arg16[%c0_36, %c24], %117 {strides = array<i32>} : memref<16x32xf32, #tpu.memory_space<vmem>>, vector<16x8xf32>,
    %c0_37 = arith.constant 0 : index
    %c0_38 = arith.constant 0 : index
    %119 = vector.load %arg16[%c0_37, %c0_38] : memref<16x32xf32, #tpu.memory_space<vmem>>, vector<16x32xf32>
    %120 = arith.truncf %119 : vector<16x32xf32> to vector<16x32xbf16>
    %c0_39 = arith.constant 0 : index
    %c0_40 = arith.constant 0 : index
    %121 = vector.load %arg7[%c0_39, %c0_40] : memref<32x32xbf16, #tpu.memory_space<vmem>>, vector<32x32xbf16>
    %cst_41 = arith.constant dense<0.000000e+00> : vector<16x32xf32>
    %122 = tpu.matmul %120, %121, %cst_41 {dimension_numbers = #tpu.dot_dimension_numbers<[1], [0], [0], [1], [0, 0, 1, 1], [], []>} : vector<16x32xbf16>, vector<32x32xbf16>, vector<16x32xf32> -> vector<16x32xf32>
    %c0_42 = arith.constant 0 : index
    %c0_43 = arith.constant 0 : index
    %123 = vector.load %arg8[%c0_42, %c0_43] : memref<1x32xf32, #tpu.memory_space<vmem>>, vector<1x32xf32>
    %124 = vector.broadcast %123 : vector<1x32xf32> to vector<16x32xf32>
    %125 = arith.addf %122, %124 : vector<16x32xf32>
    %cst_44 = arith.constant dense<0.000000e+00> : vector<16xf32>
    %126 = vector.multi_reduction <add>, %125, %cst_44 [1] : vector<16x32xf32> to vector<16xf32>
    %127 = vector.shape_cast %126 : vector<16xf32> to vector<16x1xf32>
    %cst_45 = arith.constant 3.200000e+01 : f32
    %128 = vector.broadcast %cst_45 : f32 to vector<16x1xf32>
    %129 = arith.divf %127, %128 : vector<16x1xf32>
    %130 = vector.broadcast %129 : vector<16x1xf32> to vector<16x32xf32>
    %131 = arith.subf %125, %130 : vector<16x32xf32>
    %132 = arith.mulf %131, %131 : vector<16x32xf32>
    %cst_46 = arith.constant dense<0.000000e+00> : vector<16xf32>
    %133 = vector.multi_reduction <add>, %132, %cst_46 [1] : vector<16x32xf32> to vector<16xf32>
    %134 = vector.shape_cast %133 : vector<16xf32> to vector<16x1xf32>
    %cst_47 = arith.constant 3.200000e+01 : f32
    %135 = vector.broadcast %cst_47 : f32 to vector<16x1xf32>
    %136 = arith.divf %134, %135 : vector<16x1xf32>
    %137 = vector.broadcast %129 : vector<16x1xf32> to vector<16x32xf32>
    %138 = arith.subf %125, %137 : vector<16x32xf32>
    %cst_48 = arith.constant 9.99999974E-6 : f32
    %139 = vector.broadcast %cst_48 : f32 to vector<16x1xf32>
    %140 = arith.addf %136, %139 : vector<16x1xf32>
    %141 = math.rsqrt %140 : vector<16x1xf32>
    %142 = vector.broadcast %141 : vector<16x1xf32> to vector<16x32xf32>
    %143 = arith.mulf %138, %142 : vector<16x32xf32>
    %c0_49 = arith.constant 0 : index
    %c0_50 = arith.constant 0 : index
    %144 = vector.load %arg9[%c0_49, %c0_50] : memref<1x32xf32, #tpu.memory_space<vmem>>, vector<1x32xf32>
    %145 = vector.broadcast %144 : vector<1x32xf32> to vector<16x32xf32>
    %146 = arith.mulf %143, %145 : vector<16x32xf32>
    %c0_51 = arith.constant 0 : index
    %c0_52 = arith.constant 0 : index
    %147 = vector.load %arg10[%c0_51, %c0_52] : memref<1x32xf32, #tpu.memory_space<vmem>>, vector<1x32xf32>
    %148 = vector.broadcast %147 : vector<1x32xf32> to vector<16x32xf32>
    %149 = arith.addf %146, %148 : vector<16x32xf32>
    %150 = arith.truncf %149 : vector<16x32xf32> to vector<16x32xbf16>
    %c0_53 = arith.constant 0 : index
    %c0_54 = arith.constant 0 : index
    %151 = vector.load %arg11[%c0_53, %c0_54] : memref<32x64xbf16, #tpu.memory_space<vmem>>, vector<32x64xbf16>
    %cst_55 = arith.constant dense<0.000000e+00> : vector<16x64xf32>
    %152 = tpu.matmul %150, %151, %cst_55 {dimension_numbers = #tpu.dot_dimension_numbers<[1], [0], [0], [1], [0, 0, 1, 1], [], []>} : vector<16x32xbf16>, vector<32x64xbf16>, vector<16x64xf32> -> vector<16x64xf32>
    %c0_56 = arith.constant 0 : index
    %c0_57 = arith.constant 0 : index
    %153 = vector.load %arg12[%c0_56, %c0_57] : memref<1x64xf32, #tpu.memory_space<vmem>>, vector<1x64xf32>
    %154 = vector.broadcast %153 : vector<1x64xf32> to vector<16x64xf32>
    %155 = arith.addf %152, %154 : vector<16x64xf32>
    %cst_58 = arith.constant 0.000000e+00 : f32
    %156 = vector.broadcast %cst_58 : f32 to vector<16x64xf32>
    %157 = arith.maximumf %155, %156 : vector<16x64xf32>
    %158 = arith.truncf %157 : vector<16x64xf32> to vector<16x64xbf16>
    %c0_59 = arith.constant 0 : index
    %c0_60 = arith.constant 0 : index
    %159 = vector.load %arg13[%c0_59, %c0_60] : memref<64x32xbf16, #tpu.memory_space<vmem>>, vector<64x32xbf16>
    %cst_61 = arith.constant dense<0.000000e+00> : vector<16x32xf32>
    %160 = tpu.matmul %158, %159, %cst_61 {dimension_numbers = #tpu.dot_dimension_numbers<[1], [0], [0], [1], [0, 0, 1, 1], [], []>} : vector<16x64xbf16>, vector<64x32xbf16>, vector<16x32xf32> -> vector<16x32xf32>
    %c0_62 = arith.constant 0 : index
    %c0_63 = arith.constant 0 : index
    %161 = vector.load %arg14[%c0_62, %c0_63] : memref<1x32xf32, #tpu.memory_space<vmem>>, vector<1x32xf32>
    %162 = vector.broadcast %161 : vector<1x32xf32> to vector<16x32xf32>
    %163 = arith.addf %160, %162 : vector<16x32xf32>
    %c0_64 = arith.constant 0 : index
    %c0_65 = arith.constant 0 : index
    %164 = vector.load %arg15[%c0_64, %c0_65] : memref<16x32xf32, #tpu.memory_space<vmem>>, vector<16x32xf32>
    tpu.vector_store %arg15[%c0_64, %c0_65], %163 {strides = array<i32>} : memref<16x32xf32, #tpu.memory_space<vmem>>, vector<16x32xf32>,
    return
  }
  func.func @transform_0(%arg0: i32) -> (i32, i32) {
    %c0_i32 = arith.constant 0 : i32
    %c0_i32_0 = arith.constant 0 : i32
    %c0_i32_1 = arith.constant 0 : i32
    return %c0_i32, %c0_i32_0 : i32, i32
  }
  func.func @transform_1(%arg0: i32) -> (i32, i32) {
    %c0_i32 = arith.constant 0 : i32
    %c0_i32_0 = arith.constant 0 : i32
    %c0_i32_1 = arith.constant 0 : i32
    return %c0_i32, %c0_i32_0 : i32, i32
  }
  func.func @transform_2(%arg0: i32) -> (i32, i32) {
    %c0_i32 = arith.constant 0 : i32
    %c0_i32_0 = arith.constant 0 : i32
    %c0_i32_1 = arith.constant 0 : i32
    return %c0_i32, %c0_i32_0 : i32, i32
  }
  func.func @transform_3(%arg0: i32) -> (i32, i32) {
    %c0_i32 = arith.constant 0 : i32
    %c0_i32_0 = arith.constant 0 : i32
    %c0_i32_1 = arith.constant 0 : i32
    return %c0_i32, %c0_i32_0 : i32, i32
  }
  func.func @transform_4(%arg0: i32) -> (i32, i32) {
    %c0_i32 = arith.constant 0 : i32
    %c0_i32_0 = arith.constant 0 : i32
    %c0_i32_1 = arith.constant 0 : i32
    return %c0_i32, %c0_i32_0 : i32, i32
  }
  func.func @transform_5(%arg0: i32) -> (i32, i32) {
    %c0_i32 = arith.constant 0 : i32
    %c0_i32_0 = arith.constant 0 : i32
    %c0_i32_1 = arith.constant 0 : i32
    return %c0_i32, %c0_i32_0 : i32, i32
  }
  func.func @transform_6(%arg0: i32) -> (i32, i32) {
    %c0_i32 = arith.constant 0 : i32
    %c0_i32_0 = arith.constant 0 : i32
    %c0_i32_1 = arith.constant 0 : i32
    return %c0_i32, %c0_i32_0 : i32, i32
  }
  func.func @transform_7(%arg0: i32) -> (i32, i32) {
    %c0_i32 = arith.constant 0 : i32
    %c0_i32_0 = arith.constant 0 : i32
    %c0_i32_1 = arith.constant 0 : i32
    return %c0_i32, %c0_i32_0 : i32, i32
  }
  func.func @transform_8(%arg0: i32) -> (i32, i32) {
    %c0_i32 = arith.constant 0 : i32
    %c0_i32_0 = arith.constant 0 : i32
    %c0_i32_1 = arith.constant 0 : i32
    return %c0_i32, %c0_i32_0 : i32, i32
  }
  func.func @transform_9(%arg0: i32) -> (i32, i32) {
    %c0_i32 = arith.constant 0 : i32
    %c0_i32_0 = arith.constant 0 : i32
    %c0_i32_1 = arith.constant 0 : i32
    return %c0_i32, %c0_i32_0 : i32, i32
  }
  func.func @transform_10(%arg0: i32) -> (i32, i32) {
    %c0_i32 = arith.constant 0 : i32
    %c0_i32_0 = arith.constant 0 : i32
    %c0_i32_1 = arith.constant 0 : i32
    return %c0_i32, %c0_i32_0 : i32, i32
  }
  func.func @transform_11(%arg0: i32) -> (i32, i32) {
    %c0_i32 = arith.constant 0 : i32
    %c0_i32_0 = arith.constant 0 : i32
    %c0_i32_1 = arith.constant 0 : i32
    return %c0_i32, %c0_i32_0 : i32, i32
  }
  func.func @transform_12(%arg0: i32) -> (i32, i32) {
    %c0_i32 = arith.constant 0 : i32
    %c0_i32_0 = arith.constant 0 : i32
    %c0_i32_1 = arith.constant 0 : i32
    return %c0_i32, %c0_i32_0 : i32, i32
  }
  func.func @transform_13(%arg0: i32) -> (i32, i32) {
    %c0_i32 = arith.constant 0 : i32
    %c0_i32_0 = arith.constant 0 : i32
    %c0_i32_1 = arith.constant 0 : i32
    return %c0_i32, %c0_i32_0 : i32, i32
  }
  func.func @transform_14(%arg0: i32) -> (i32, i32) {
    %c0_i32 = arith.constant 0 : i32
    %c0_i32_0 = arith.constant 0 : i32
    %c0_i32_1 = arith.constant 0 : i32
    return %c0_i32, %c0_i32_0 : i32, i32
  }
}

</mosaic_0001>

<llo_original>
// kernel: tpu_custom_call.1
$region0: #{tpu_custom_call.1}
  #allocation0 [shape = 'u32[]', space=smem, size = 0x4, offset = 0x4, fixed_abs, tag = 'smem constant byte address 0x4 - core index']
  #allocation1 [shape = 'u32[144,128]{1,0:T(1,128)}', space=vmem, size = 0x12000, scoped, tag = 'internal scratch']
  #allocation2 [shape = 'f32[16,32]{1,0:T(8,128)}', space=vmem, size = 0x2000, scoped, tag = 'scratch operand']
  %s0 = inlined_call_operand.vmem [shape: f32[16,32], index: 0, kind: input, shape index: {}]
  %s1 = inlined_call_operand.vmem [shape: f32[16,16], index: 1, kind: input, shape index: {}]
  %s2 = inlined_call_operand.vmem [shape: f32[1,32], index: 2, kind: input, shape index: {}]
  %s3 = inlined_call_operand.vmem [shape: f32[1,32], index: 3, kind: input, shape index: {}]
  %s4 = inlined_call_operand.vmem [shape: bf16[32,96], index: 4, kind: input, shape index: {}]
  %s5 = inlined_call_operand.hbm [shape: f32[1,96], index: 5, kind: input, shape index: {}]
  %s6 = inlined_call_operand.hbm [shape: bf16[32,32], index: 6, kind: input, shape index: {}]
  %s7 = inlined_call_operand.hbm [shape: f32[1,32], index: 7, kind: input, shape index: {}]
  %s8 = inlined_call_operand.hbm [shape: f32[1,32], index: 8, kind: input, shape index: {}]
  %s9 = inlined_call_operand.hbm [shape: f32[1,32], index: 9, kind: input, shape index: {}]
  %s10 = inlined_call_operand.vmem [shape: bf16[32,64], index: 10, kind: input, shape index: {}]
  %s11 = inlined_call_operand.vmem [shape: f32[1,64], index: 11, kind: input, shape index: {}]
  %s12 = inlined_call_operand.vmem [shape: bf16[64,32], index: 12, kind: input, shape index: {}]
  %s13 = inlined_call_operand.vmem [shape: f32[1,32], index: 13, kind: input, shape index: {}]
  %s14 = inlined_call_operand.hbm [shape: f32[16,32], index: 14, kind: output, shape index: {}]
  %s15 = sld [smem:[#allocation0]]
  $region86: #{tpu_custom_call.1} parent=0
    _
  %s17 = ssub.s32 1, %s15
  %s18 = scalar_select 0, %s17, %s15
  $region1: #{tpu_custom_call.1} parent=0
    #allocation3 [shape = 'u8[512]{0}', space=vmem, size = 0x400, scoped, tag = 'input window, operand 5, single buffered']
    #allocation4 [shape = 's32[1]{0}', space=sflag, size = 0x4, scoped, tag = 'scoped memory for tpu_custom_call.1']
    #allocation5 [shape = 's32[1]{0}', space=sflag, size = 0x4, scoped, tag = 'scoped memory for tpu_custom_call.1']
    #allocation6 [shape = 'u8[8192]{0}', space=vmem, size = 0x2000, scoped, tag = 'input window, operand 6, single buffered']
    #allocation7 [shape = 's32[1]{0}', space=sflag, size = 0x4, scoped, tag = 'scoped memory for tpu_custom_call.1']
    #allocation8 [shape = 'u8[512]{0}', space=vmem, size = 0x400, scoped, tag = 'input window, operand 7, single buffered']
    #allocation9 [shape = 'u8[512]{0}', space=vmem, size = 0x400, scoped, tag = 'input window, operand 8, single buffered']
    #allocation10 [shape = 's32[1]{0}', space=sflag, size = 0x4, scoped, tag = 'scoped memory for tpu_custom_call.1']
    #allocation11 [shape = 'u8[512]{0}', space=vmem, size = 0x400, scoped, tag = 'input window, operand 9, single buffered']
    #allocation12 [shape = 'u8[8192]{0}', space=vmem, size = 0x2000, scoped, tag = 'output window, operand 0, single buffered']
    %19 = vsyncpa [#allocation4], 0
    %20 = vsyncpa [#allocation7], 0
    %21 = vsyncpa [#allocation10], 0
    %22 = vsyncpa [#allocation5], 0
    // Predicated region
    $region2: #{tpu_custom_call.1} parent=1 // pred_check
      _
    $region3: #{tpu_custom_call.1} parent=1 // pred_check_branch
      %24 = sbr.rel (0) target = $region5
    $region4: #{tpu_custom_call.1} parent=1 // pred_region
      _
    $region5: #{tpu_custom_call.1} parent=1 // pred_fallthru
      _
    // Predicated region
    $region6: #{tpu_custom_call.1} parent=1 // pred_check
      _
    $region7: #{tpu_custom_call.1} parent=1 // pred_check_branch
      %26 = sbr.rel (0) target = $region9
    $region8: #{tpu_custom_call.1} parent=1 // pred_region
      _
    $region9: #{tpu_custom_call.1} parent=1 // pred_fallthru
      _
    // Predicated region
    $region10: #{tpu_custom_call.1} parent=1 // pred_check
      _
    $region11: #{tpu_custom_call.1} parent=1 // pred_check_branch
      %28 = sbr.rel (0) target = $region13
    $region12: #{tpu_custom_call.1} parent=1 // pred_region
      _
    $region13: #{tpu_custom_call.1} parent=1 // pred_fallthru
      _
    // Predicated region
    $region14: #{tpu_custom_call.1} parent=1 // pred_check
      _
    $region15: #{tpu_custom_call.1} parent=1 // pred_check_branch
      %30 = sbr.rel (0) target = $region17
    $region16: #{tpu_custom_call.1} parent=1 // pred_region
      _
    $region17: #{tpu_custom_call.1} parent=1 // pred_fallthru
      _
    // Predicated region
    $region18: #{tpu_custom_call.1} parent=1 // pred_check
      _
    $region19: #{tpu_custom_call.1} parent=1 // pred_check_branch
      %32 = sbr.rel (0) target = $region21
    $region20: #{tpu_custom_call.1} parent=1 // pred_region
      _
    $region21: #{tpu_custom_call.1} parent=1 // pred_fallthru
      _
    // Predicated region
    $region22: #{tpu_custom_call.1} parent=1 // pred_check
      _
    $region23: #{tpu_custom_call.1} parent=1 // pred_check_branch
      %34 = sbr.rel (0) target = $region25
    $region24: #{tpu_custom_call.1} parent=1 // pred_region
      %s36 = ssub.s32 16, 16
      %37 = vsyncadd [#allocation4], %s36
      %s39 = sshll.u32 [#allocation3], 4
      %s40 = int_to_ptr.vmem [resolvable:$true] %s39
      %42 = dma.hbm_to_vmem [thread:$0]  %s5, 16, %s40, [#allocation4]
    $region25: #{tpu_custom_call.1} parent=1 // pred_fallthru
      _
    // Predicated region
    $region26: #{tpu_custom_call.1} parent=1 // pred_check
      _
    $region27: #{tpu_custom_call.1} parent=1 // pred_check_branch
      %44 = sbr.rel (0) target = $region29
    $region28: #{tpu_custom_call.1} parent=1 // pred_region
      %s46 = ssub.s32 256, 256
      %47 = vsyncadd [#allocation7], %s46
      %s48 = sshll.u32 [#allocation6], 4
      %s49 = int_to_ptr.vmem [resolvable:$true] %s48
      %54 = dma.hbm_to_vmem [thread:$0]  %s6, 256, %s49, [#allocation7], 64, 64, 4
    $region29: #{tpu_custom_call.1} parent=1 // pred_fallthru
      _
    // Predicated region
    $region30: #{tpu_custom_call.1} parent=1 // pred_check
      _
    $region31: #{tpu_custom_call.1} parent=1 // pred_check_branch
      %56 = sbr.rel (0) target = $region33
    $region32: #{tpu_custom_call.1} parent=1 // pred_region
      %s58 = ssub.s32 16, 16
      %59 = vsyncadd [#allocation7], %s58
      %s61 = sshll.u32 [#allocation8], 4
      %s62 = int_to_ptr.vmem [resolvable:$true] %s61
      %64 = dma.hbm_to_vmem [thread:$0]  %s7, 16, %s62, [#allocation7]
    $region33: #{tpu_custom_call.1} parent=1 // pred_fallthru
      _
    // Predicated region
    $region34: #{tpu_custom_call.1} parent=1 // pred_check
      _
    $region35: #{tpu_custom_call.1} parent=1 // pred_check_branch
      %66 = sbr.rel (0) target = $region37
    $region36: #{tpu_custom_call.1} parent=1 // pred_region
      %s68 = ssub.s32 16, 16
      %69 = vsyncadd [#allocation10], %s68
      %s71 = sshll.u32 [#allocation9], 4
      %s72 = int_to_ptr.vmem [resolvable:$true] %s71
      %74 = dma.hbm_to_vmem [thread:$0]  %s8, 16, %s72, [#allocation10]
    $region37: #{tpu_custom_call.1} parent=1 // pred_fallthru
      _
    // Predicated region
    $region38: #{tpu_custom_call.1} parent=1 // pred_check
      _
    $region39: #{tpu_custom_call.1} parent=1 // pred_check_branch
      %76 = sbr.rel (0) target = $region41
    $region40: #{tpu_custom_call.1} parent=1 // pred_region
      %s78 = ssub.s32 16, 16
      %79 = vsyncadd [#allocation10], %s78
      %s81 = sshll.u32 [#allocation11], 4
      %s82 = int_to_ptr.vmem [resolvable:$true] %s81
      %84 = dma.hbm_to_vmem [thread:$0]  %s9, 16, %s82, [#allocation10]
    $region41: #{tpu_custom_call.1} parent=1 // pred_fallthru
      _
    // Predicated region
    $region42: #{tpu_custom_call.1} parent=1 // pred_check
      _
    $region43: #{tpu_custom_call.1} parent=1 // pred_check_branch
      %86 = sbr.rel (0) target = $region45
    $region44: #{tpu_custom_call.1} parent=1 // pred_region
      _
    $region45: #{tpu_custom_call.1} parent=1 // pred_fallthru
      _
    // Predicated region
    $region46: #{tpu_custom_call.1} parent=1 // pred_check
      _
    $region47: #{tpu_custom_call.1} parent=1 // pred_check_branch
      %88 = sbr.rel (0) target = $region49
    $region48: #{tpu_custom_call.1} parent=1 // pred_region
      _
    $region49: #{tpu_custom_call.1} parent=1 // pred_fallthru
      _
    // Predicated region
    $region50: #{tpu_custom_call.1} parent=1 // pred_check
      _
    $region51: #{tpu_custom_call.1} parent=1 // pred_check_branch
      %90 = sbr.rel (0) target = $region53
    $region52: #{tpu_custom_call.1} parent=1 // pred_region
      _
    $region53: #{tpu_custom_call.1} parent=1 // pred_fallthru
      _
    // Predicated region
    $region54: #{tpu_custom_call.1} parent=1 // pred_check
      _
    $region55: #{tpu_custom_call.1} parent=1 // pred_check_branch
      %92 = sbr.rel (0) target = $region57
    $region56: #{tpu_custom_call.1} parent=1 // pred_region
      _
    $region57: #{tpu_custom_call.1} parent=1 // pred_fallthru
      _
    // Predicated region
    $region58: #{tpu_custom_call.1} parent=1 // pred_check
      _
    $region59: #{tpu_custom_call.1} parent=1 // pred_check_branch
      %94 = sbr.rel (0) target = $region61
    $region60: #{tpu_custom_call.1} parent=1 // pred_region
      %95 = dma.done [#allocation4], 16
    $region61: #{tpu_custom_call.1} parent=1 // pred_fallthru
      _
    // Predicated region
    $region62: #{tpu_custom_call.1} parent=1 // pred_check
      _
    $region63: #{tpu_custom_call.1} parent=1 // pred_check_branch
      %97 = sbr.rel (0) target = $region65
    $region64: #{tpu_custom_call.1} parent=1 // pred_region
      %98 = dma.done [#allocation7], 256
    $region65: #{tpu_custom_call.1} parent=1 // pred_fallthru
      _
    // Predicated region
    $region66: #{tpu_custom_call.1} parent=1 // pred_check
      _
    $region67: #{tpu_custom_call.1} parent=1 // pred_check_branch
      %100 = sbr.rel (0) target = $region69
    $region68: #{tpu_custom_call.1} parent=1 // pred_region
      %101 = dma.done [#allocation7], 16
    $region69: #{tpu_custom_call.1} parent=1 // pred_fallthru
      _
    // Predicated region
    $region70: #{tpu_custom_call.1} parent=1 // pred_check
      _
    $region71: #{tpu_custom_call.1} parent=1 // pred_check_branch
      %103 = sbr.rel (0) target = $region73
    $region72: #{tpu_custom_call.1} parent=1 // pred_region
      %104 = dma.done [#allocation10], 16
    $region73: #{tpu_custom_call.1} parent=1 // pred_fallthru
      _
    // Predicated region
    $region74: #{tpu_custom_call.1} parent=1 // pred_check
      _
    $region75: #{tpu_custom_call.1} parent=1 // pred_check_branch
      %106 = sbr.rel (0) target = $region77
    $region76: #{tpu_custom_call.1} parent=1 // pred_region
      %107 = dma.done [#allocation10], 16
    $region77: #{tpu_custom_call.1} parent=1 // pred_fallthru
      _
    %v109 = vld [vmem:[%s0] sm:$0xff]
    %v110 = vld [vmem:[%s0 + $0x8] sm:$0xff]
    %vm111 = vcmask 261120
    %v112 = vsel %vm111, %v109, 0.0
    %113 = vadd.xlane.f32.xlu0 %v112
    %v114 = vpop.xlane.xlu0 %113
    %v115 = vsel %vm111, %v110, 0.0
    %116 = vadd.xlane.f32.xlu0 %v115
    %v117 = vpop.xlane.xlu0 %116
    %v118 = vrcp.pop 32.0
    %v119 = vmul.f32 %v114, %v118
    %v120 = vmul.f32 %v117, %v118
    %v121 = vsub.f32 %v109, %v119
    %v122 = vsub.f32 %v110, %v120
    %v123 = vmul.f32 %v121, %v121
    %v124 = vmul.f32 %v122, %v122
    %v125 = vsel %vm111, %v123, 0.0
    %126 = vadd.xlane.f32.xlu0 %v125
    %v127 = vpop.xlane.xlu0 %126
    %v128 = vsel %vm111, %v124, 0.0
    %129 = vadd.xlane.f32.xlu0 %v128
    %v130 = vpop.xlane.xlu0 %129
    %v131 = vmul.f32 %v127, %v118
    %v132 = vmul.f32 %v130, %v118
    %v133 = vadd.f32 %v131, 1e-05
    %v134 = vadd.f32 %v132, 1e-05
    %v135 = vrsqrt.pop %v133
    %v136 = vrsqrt.pop %v134
    %v137 = vmul.f32 %v121, %v135
    %v138 = vmul.f32 %v122, %v136
    %v139 = vld [vmem:[%s2] sm:$0x1]
    %v141 = vlaneseq
    %v142 = vshrl.u32 %v141, 7
    %v143 = vsub.s32 0, %v142
    %v144 = vrot.slane %v139, %v143
    %v146 = vmul.f32 %v137, %v144
    %v147 = vmul.f32 %v138, %v144
    %v148 = vld [vmem:[%s3] sm:$0x1]
    %v150 = vlaneseq
    %v151 = vshrl.u32 %v150, 7
    %v152 = vsub.s32 0, %v151
    %v153 = vrot.slane %v148, %v152
    %v155 = vadd.f32 %v146, %v153
    %v156 = vadd.f32 %v147, %v153
    %v157 = vpack.c.bf16 %v156, %v155
    %v158 = vld [vmem:[%s4] sm:$0xf]
    %v159 = vld [vmem:[%s4 + $0x4] sm:$0xf]
    %v160 = vld [vmem:[%s4 + $0x8] sm:$0xf]
    %v161 = vld [vmem:[%s4 + $0xc] sm:$0xf]
    %v162 = vld [vmem:[#allocation3] sm:$0x1]
    %v164 = vlaneseq
    %v165 = vshrl.u32 %v164, 7
    %v166 = vsub.s32 0, %v165
    %v167 = vrot.slane %v162, %v166
    %v173 = vunpack.c.l.b16 %v158
    %v174 = vunpack.c.l.b16 %v159
    %v175 = vunpack.c.l.b16 %v160
    %v176 = vunpack.c.l.b16 %v161
    %v177 = vpack.c.b16 %v174, %v173
    %v178 = vpack.c.b16 %v176, %v175
    %v182 = vsel %vm111, %v157, 0
    %184 = vmatprep.subr.bf16.mxu0 0
    %185 = vmatpush1.bf16.msra.mxu0 %v177
    %186 = vmatprep.subr.bf16.mxu0 0
    %187 = vmatpush1.bf16.msra.mxu0 %v178
    %188 = vmatprep.subr.bf16.mxu0 0
    %189 = vmatpush1.bf16.msra.mxu0 0
    %190 = vmatprep.subr.bf16.mxu0 0
    %191 = vmatpush1.bf16.msra.mxu0 0
    %192 = vmatprep.subr.bf16.mxu0 0
    %193 = vmatpush1.bf16.msra.mxu0 0
    %194 = vmatprep.subr.bf16.mxu0 0
    %195 = vmatpush1.bf16.msra.mxu0 0
    %196 = vmatprep.subr.bf16.mxu0 0
    %197 = vmatpush1.bf16.msra.mxu0 0
    %198 = vmatprep.subr.bf16.mxu0 0
    %199 = vmatpush1.bf16.msra.mxu0 0
    %200 = vmatprep.subr.bf16.mxu0 0
    %201 = vmatpush1.bf16.msra.mxu0 0
    %202 = vmatprep.subr.bf16.mxu0 0
    %203 = vmatpush1.bf16.msra.mxu0 0
    %204 = vmatprep.subr.bf16.mxu0 0
    %205 = vmatpush1.bf16.msra.mxu0 0
    %206 = vmatprep.subr.bf16.mxu0 0
    %207 = vmatpush1.bf16.msra.mxu0 0
    %208 = vmatprep.subr.bf16.mxu0 0
    %209 = vmatpush1.bf16.msra.mxu0 0
    %210 = vmatprep.subr.bf16.mxu0 0
    %211 = vmatpush1.bf16.msra.mxu0 0
    %212 = vmatprep.subr.bf16.mxu0 0
    %213 = vmatpush1.bf16.msra.mxu0 0
    %214 = vmatprep.subr.bf16.mxu0 0
    %215 = vmatpush1.bf16.msra.mxu0 0
    %216 = vmatprep.mubr.bf16.mxu0 0
    %217 = vmatmul.mubr.bf16.gmra.mrb[0].mxu0 %v182
    %v218 = vpop.f32.mrb[0].mxu0
    %v219 = vadd.f32 %v167, %v218
    %v220 = vpop.f32.mrb[0].mxu0
    %v221 = vpop.f32.mrb[0].mxu0
    %v222 = vadd.f32 %v167, %v221
    %v223 = vpop.f32.mrb[0].mxu0
    %224 = vdwg.mxu0
    %v225 = vld [vmem:[%s1] sm:$0xff]
    %v226 = vld [vmem:[%s1 + $0x8] sm:$0xff]
    %v227 = vpack.c.bf16 %v222, %v219
    %229 = vrot.lane.b32.xlu0 %v227, 96
    %v230 = vpop.permute.xlu0 %229
    %vm231 = vcmask 64512
    %v233 = vsel %vm231, %v227, 0
    %v236 = vsel %vm231, %v230, 0
    %238 = vmatprep.subr.bf16.mxu0 0
    %239 = vmatpush1.bf16.xpose.msra.mxu0 %v236
    %240 = vmatprep.subr.bf16.mxu0 0
    %241 = vmatpush1.bf16.xpose.msra.mxu0 0
    %242 = vmatprep.subr.bf16.mxu0 0
    %243 = vmatpush1.bf16.xpose.msra.mxu0 0
    %244 = vmatprep.subr.bf16.mxu0 0
    %245 = vmatpush1.bf16.xpose.msra.mxu0 0
    %246 = vmatprep.subr.bf16.mxu0 0
    %247 = vmatpush1.bf16.xpose.msra.mxu0 0
    %248 = vmatprep.subr.bf16.mxu0 0
    %249 = vmatpush1.bf16.xpose.msra.mxu0 0
    %250 = vmatprep.subr.bf16.mxu0 0
    %251 = vmatpush1.bf16.xpose.msra.mxu0 0
    %252 = vmatprep.subr.bf16.mxu0 0
    %253 = vmatpush1.bf16.xpose.msra.mxu0 0
    %254 = vmatprep.subr.bf16.mxu0 0
    %255 = vmatpush1.bf16.xpose.msra.mxu0 0
    %256 = vmatprep.subr.bf16.mxu0 0
    %257 = vmatpush1.bf16.xpose.msra.mxu0 0
    %258 = vmatprep.subr.bf16.mxu0 0
    %259 = vmatpush1.bf16.xpose.msra.mxu0 0
    %260 = vmatprep.subr.bf16.mxu0 0
    %261 = vmatpush1.bf16.xpose.msra.mxu0 0
    %262 = vmatprep.subr.bf16.mxu0 0
    %263 = vmatpush1.bf16.xpose.msra.mxu0 0
    %264 = vmatprep.subr.bf16.mxu0 0
    %265 = vmatpush1.bf16.xpose.msra.mxu0 0
    %266 = vmatprep.subr.bf16.mxu0 0
    %267 = vmatpush1.bf16.xpose.msra.mxu0 0
    %268 = vmatprep.subr.bf16.mxu0 0
    %269 = vmatpush1.bf16.xpose.msra.mxu0 0
    %270 = vmatprep.mubr.bf16.mxu0 0
    %271 = vmatmul.mubr.bf16.gmra.mrb[0].mxu0 %v233
    %v272 = vpop.f32.mrb[0].mxu0
    %v273 = vadd.f32 %v225, %v272
    %v274 = vpop.f32.mrb[0].mxu0
    %v275 = vpop.f32.mrb[0].mxu0
    %v276 = vadd.f32 %v226, %v275
    %v277 = vpop.f32.mrb[0].mxu0
    %278 = vdwg.mxu0
    %vm279 = vcmask 130048
    %v280 = vsel %vm279, %v273, -inf
    %281 = vmax.xlane.f32.xlu0 %v280
    %v282 = vpop.xlane.xlu0 %281
    %v283 = vsel %vm279, %v276, -inf
    %284 = vmax.xlane.f32.xlu0 %v283
    %v285 = vpop.xlane.xlu0 %284
    %v286 = vsub.f32 %v273, %v282
    %v287 = vsub.f32 %v276, %v285
    %v288 = vmul.f32 %v286, 1.442695
    %v289 = vpow.pop %v288
    %v290 = vmul.f32 %v287, 1.442695
    %v291 = vpow.pop %v290
    %v292 = vsel %vm279, %v289, 0.0
    %293 = vadd.xlane.f32.xlu0 %v292
    %v294 = vpop.xlane.xlu0 %293
    %v295 = vsel %vm279, %v291, 0.0
    %296 = vadd.xlane.f32.xlu0 %v295
    %v297 = vpop.xlane.xlu0 %296
    %v298 = vrcp.pop %v294
    %v299 = vrcp.pop %v297
    %v300 = vmul.f32 %v289, %v298
    %v301 = vmul.f32 %v291, %v299
    %v302 = vpack.c.bf16 %v301, %v300
    %303 = vrot.lane.b32.xlu0 %v227, 64
    %v304 = vpop.permute.xlu0 %303
    %v307 = vsel %vm279, %v302, 0
    %309 = vmatprep.subr.bf16.mxu0 0
    %310 = vmatpush1.bf16.msra.mxu0 %v304
    %311 = vmatprep.subr.bf16.mxu0 0
    %312 = vmatpush1.bf16.msra.mxu0 0
    %313 = vmatprep.subr.bf16.mxu0 0
    %314 = vmatpush1.bf16.msra.mxu0 0
    %315 = vmatprep.subr.bf16.mxu0 0
    %316 = vmatpush1.bf16.msra.mxu0 0
    %317 = vmatprep.subr.bf16.mxu0 0
    %318 = vmatpush1.bf16.msra.mxu0 0
    %319 = vmatprep.subr.bf16.mxu0 0
    %320 = vmatpush1.bf16.msra.mxu0 0
    %321 = vmatprep.subr.bf16.mxu0 0
    %322 = vmatpush1.bf16.msra.mxu0 0
    %323 = vmatprep.subr.bf16.mxu0 0
    %324 = vmatpush1.bf16.msra.mxu0 0
    %325 = vmatprep.subr.bf16.mxu0 0
    %326 = vmatpush1.bf16.msra.mxu0 0
    %327 = vmatprep.subr.bf16.mxu0 0
    %328 = vmatpush1.bf16.msra.mxu0 0
    %329 = vmatprep.subr.bf16.mxu0 0
    %330 = vmatpush1.bf16.msra.mxu0 0
    %331 = vmatprep.subr.bf16.mxu0 0
    %332 = vmatpush1.bf16.msra.mxu0 0
    %333 = vmatprep.subr.bf16.mxu0 0
    %334 = vmatpush1.bf16.msra.mxu0 0
    %335 = vmatprep.subr.bf16.mxu0 0
    %336 = vmatpush1.bf16.msra.mxu0 0
    %337 = vmatprep.subr.bf16.mxu0 0
    %338 = vmatpush1.bf16.msra.mxu0 0
    %339 = vmatprep.subr.bf16.mxu0 0
    %340 = vmatpush1.bf16.msra.mxu0 0
    %341 = vmatprep.mubr.bf16.mxu0 0
    %342 = vmatmul.mubr.bf16.gmra.mrb[0].mxu0 %v307
    %v343 = vpop.f32.mrb[0].mxu0
    %v344 = vadd.f32 0.0, %v343
    %v345 = vpop.f32.mrb[0].mxu0
    %v346 = vpop.f32.mrb[0].mxu0
    %v347 = vadd.f32 0.0, %v346
    %v348 = vpop.f32.mrb[0].mxu0
    %349 = vdwg.mxu0
    %350 = vst.msk [vmem:[#allocation2] sm:$0xff] %vm231, %v344
    %351 = vst.msk [vmem:[#allocation2 + $0x8] sm:$0xff] %vm231, %v347
    %352 = vrot.lane.b32.xlu0 %v227, 120
    %v353 = vpop.permute.xlu0 %352
    %354 = vrot.lane.b32.xlu0 %v227, 88
    %v355 = vpop.permute.xlu0 %354
    %v357 = vsel %vm231, %v353, 0
    %v360 = vsel %vm231, %v355, 0
    %362 = vmatprep.subr.bf16.mxu0 0
    %363 = vmatpush1.bf16.xpose.msra.mxu0 %v360
    %364 = vmatprep.subr.bf16.mxu0 0
    %365 = vmatpush1.bf16.xpose.msra.mxu0 0
    %366 = vmatprep.subr.bf16.mxu0 0
    %367 = vmatpush1.bf16.xpose.msra.mxu0 0
    %368 = vmatprep.subr.bf16.mxu0 0
    %369 = vmatpush1.bf16.xpose.msra.mxu0 0
    %370 = vmatprep.subr.bf16.mxu0 0
    %371 = vmatpush1.bf16.xpose.msra.mxu0 0
    %372 = vmatprep.subr.bf16.mxu0 0
    %373 = vmatpush1.bf16.xpose.msra.mxu0 0
    %374 = vmatprep.subr.bf16.mxu0 0
    %375 = vmatpush1.bf16.xpose.msra.mxu0 0
    %376 = vmatprep.subr.bf16.mxu0 0
    %377 = vmatpush1.bf16.xpose.msra.mxu0 0
    %378 = vmatprep.subr.bf16.mxu0 0
    %379 = vmatpush1.bf16.xpose.msra.mxu0 0
    %380 = vmatprep.subr.bf16.mxu0 0
    %381 = vmatpush1.bf16.xpose.msra.mxu0 0
    %382 = vmatprep.subr.bf16.mxu0 0
    %383 = vmatpush1.bf16.xpose.msra.mxu0 0
    %384 = vmatprep.subr.bf16.mxu0 0
    %385 = vmatpush1.bf16.xpose.msra.mxu0 0
    %386 = vmatprep.subr.bf16.mxu0 0
    %387 = vmatpush1.bf16.xpose.msra.mxu0 0
    %388 = vmatprep.subr.bf16.mxu0 0
    %389 = vmatpush1.bf16.xpose.msra.mxu0 0
    %390 = vmatprep.subr.bf16.mxu0 0
    %391 = vmatpush1.bf16.xpose.msra.mxu0 0
    %392 = vmatprep.subr.bf16.mxu0 0
    %393 = vmatpush1.bf16.xpose.msra.mxu0 0
    %394 = vmatprep.mubr.bf16.mxu0 0
    %395 = vmatmul.mubr.bf16.gmra.mrb[0].mxu0 %v357
    %v396 = vpop.f32.mrb[0].mxu0
    %v397 = vadd.f32 %v225, %v396
    %v398 = vpop.f32.mrb[0].mxu0
    %v399 = vpop.f32.mrb[0].mxu0
    %v400 = vadd.f32 %v226, %v399
    %v401 = vpop.f32.mrb[0].mxu0
    %402 = vdwg.mxu0
    %v403 = vsel %vm279, %v397, -inf
    %404 = vmax.xlane.f32.xlu0 %v403
    %v405 = vpop.xlane.xlu0 %404
    %v406 = vsel %vm279, %v400, -inf
    %407 = vmax.xlane.f32.xlu0 %v406
    %v408 = vpop.xlane.xlu0 %407
    %v409 = vsub.f32 %v397, %v405
    %v410 = vsub.f32 %v400, %v408
    %v411 = vmul.f32 %v409, 1.442695
    %v412 = vpow.pop %v411
    %v413 = vmul.f32 %v410, 1.442695
    %v414 = vpow.pop %v413
    %v415 = vsel %vm279, %v412, 0.0
    %416 = vadd.xlane.f32.xlu0 %v415
    %v417 = vpop.xlane.xlu0 %416
    %v418 = vsel %vm279, %v414, 0.0
    %419 = vadd.xlane.f32.xlu0 %v418
    %v420 = vpop.xlane.xlu0 %419
    %v421 = vrcp.pop %v417
    %v422 = vrcp.pop %v420
    %v423 = vmul.f32 %v412, %v421
    %v424 = vmul.f32 %v414, %v422
    %v425 = vpack.c.bf16 %v424, %v423
    %426 = vrot.lane.b32.xlu0 %v227, 56
    %v427 = vpop.permute.xlu0 %426
    %v430 = vsel %vm279, %v425, 0
    %432 = vmatprep.subr.bf16.mxu0 0
    %433 = vmatpush1.bf16.msra.mxu0 %v427
    %434 = vmatprep.subr.bf16.mxu0 0
    %435 = vmatpush1.bf16.msra.mxu0 0
    %436 = vmatprep.subr.bf16.mxu0 0
    %437 = vmatpush1.bf16.msra.mxu0 0
    %438 = vmatprep.subr.bf16.mxu0 0
    %439 = vmatpush1.bf16.msra.mxu0 0
    %440 = vmatprep.subr.bf16.mxu0 0
    %441 = vmatpush1.bf16.msra.mxu0 0
    %442 = vmatprep.subr.bf16.mxu0 0
    %443 = vmatpush1.bf16.msra.mxu0 0
    %444 = vmatprep.subr.bf16.mxu0 0
    %445 = vmatpush1.bf16.msra.mxu0 0
    %446 = vmatprep.subr.bf16.mxu0 0
    %447 = vmatpush1.bf16.msra.mxu0 0
    %448 = vmatprep.subr.bf16.mxu0 0
    %449 = vmatpush1.bf16.msra.mxu0 0
    %450 = vmatprep.subr.bf16.mxu0 0
    %451 = vmatpush1.bf16.msra.mxu0 0
    %452 = vmatprep.subr.bf16.mxu0 0
    %453 = vmatpush1.bf16.msra.mxu0 0
    %454 = vmatprep.subr.bf16.mxu0 0
    %455 = vmatpush1.bf16.msra.mxu0 0
    %456 = vmatprep.subr.bf16.mxu0 0
    %457 = vmatpush1.bf16.msra.mxu0 0
    %458 = vmatprep.subr.bf16.mxu0 0
    %459 = vmatpush1.bf16.msra.mxu0 0
    %460 = vmatprep.subr.bf16.mxu0 0
    %461 = vmatpush1.bf16.msra.mxu0 0
    %462 = vmatprep.subr.bf16.mxu0 0
    %463 = vmatpush1.bf16.msra.mxu0 0
    %464 = vmatprep.mubr.bf16.mxu0 0
    %465 = vmatmul.mubr.bf16.gmra.mrb[0].mxu0 %v430
    %v466 = vpop.f32.mrb[0].mxu0
    %v467 = vadd.f32 0.0, %v466
    %v468 = vpop.f32.mrb[0].mxu0
    %v469 = vpop.f32.mrb[0].mxu0
    %v470 = vadd.f32 0.0, %v469
    %v471 = vpop.f32.mrb[0].mxu0
    %472 = vdwg.mxu0
    %475 = vrot.lane.b32.xlu0 %v467, 8
    %v476 = vpop.permute.xlu0 %475
    %477 = vrot.lane.b32.xlu0 %v470, 8
    %v478 = vpop.permute.xlu0 %477
    %vm481 = vcmask 130112
    %482 = vst.msk [vmem:[#allocation2] sm:$0xff] %vm481, %v476
    %483 = vst.msk [vmem:[#allocation2 + $0x8] sm:$0xff] %vm481, %v478
    %484 = vrot.lane.b32.xlu0 %v227, 112
    %v485 = vpop.permute.xlu0 %484
    %486 = vrot.lane.b32.xlu0 %v227, 80
    %v487 = vpop.permute.xlu0 %486
    %v489 = vsel %vm231, %v485, 0
    %v492 = vsel %vm231, %v487, 0
    %494 = vmatprep.subr.bf16.mxu0 0
    %495 = vmatpush1.bf16.xpose.msra.mxu0 %v492
    %496 = vmatprep.subr.bf16.mxu0 0
    %497 = vmatpush1.bf16.xpose.msra.mxu0 0
    %498 = vmatprep.subr.bf16.mxu0 0
    %499 = vmatpush1.bf16.xpose.msra.mxu0 0
    %500 = vmatprep.subr.bf16.mxu0 0
    %501 = vmatpush1.bf16.xpose.msra.mxu0 0
    %502 = vmatprep.subr.bf16.mxu0 0
    %503 = vmatpush1.bf16.xpose.msra.mxu0 0
    %504 = vmatprep.subr.bf16.mxu0 0
    %505 = vmatpush1.bf16.xpose.msra.mxu0 0
    %506 = vmatprep.subr.bf16.mxu0 0
    %507 = vmatpush1.bf16.xpose.msra.mxu0 0
    %508 = vmatprep.subr.bf16.mxu0 0
    %509 = vmatpush1.bf16.xpose.msra.mxu0 0
    %510 = vmatprep.subr.bf16.mxu0 0
    %511 = vmatpush1.bf16.xpose.msra.mxu0 0
    %512 = vmatprep.subr.bf16.mxu0 0
    %513 = vmatpush1.bf16.xpose.msra.mxu0 0
    %514 = vmatprep.subr.bf16.mxu0 0
    %515 = vmatpush1.bf16.xpose.msra.mxu0 0
    %516 = vmatprep.subr.bf16.mxu0 0
    %517 = vmatpush1.bf16.xpose.msra.mxu0 0
    %518 = vmatprep.subr.bf16.mxu0 0
    %519 = vmatpush1.bf16.xpose.msra.mxu0 0
    %520 = vmatprep.subr.bf16.mxu0 0
    %521 = vmatpush1.bf16.xpose.msra.mxu0 0
    %522 = vmatprep.subr.bf16.mxu0 0
    %523 = vmatpush1.bf16.xpose.msra.mxu0 0
    %524 = vmatprep.subr.bf16.mxu0 0
    %525 = vmatpush1.bf16.xpose.msra.mxu0 0
    %526 = vmatprep.mubr.bf16.mxu0 0
    %527 = vmatmul.mubr.bf16.gmra.mrb[0].mxu0 %v489
    %v528 = vpop.f32.mrb[0].mxu0
    %v529 = vadd.f32 %v225, %v528
    %v530 = vpop.f32.mrb[0].mxu0
    %v531 = vpop.f32.mrb[0].mxu0
    %v532 = vadd.f32 %v226, %v531
    %v533 = vpop.f32.mrb[0].mxu0
    %534 = vdwg.mxu0
    %v535 = vsel %vm279, %v529, -inf
    %536 = vmax.xlane.f32.xlu0 %v535
    %v537 = vpop.xlane.xlu0 %536
    %v538 = vsel %vm279, %v532, -inf
    %539 = vmax.xlane.f32.xlu0 %v538
    %v540 = vpop.xlane.xlu0 %539
    %v541 = vsub.f32 %v529, %v537
    %v542 = vsub.f32 %v532, %v540
    %v543 = vmul.f32 %v541, 1.442695
    %v544 = vpow.pop %v543
    %v545 = vmul.f32 %v542, 1.442695
    %v546 = vpow.pop %v545
    %v547 = vsel %vm279, %v544, 0.0
    %548 = vadd.xlane.f32.xlu0 %v547
    %v549 = vpop.xlane.xlu0 %548
    %v550 = vsel %vm279, %v546, 0.0
    %551 = vadd.xlane.f32.xlu0 %v550
    %v552 = vpop.xlane.xlu0 %551
    %v553 = vrcp.pop %v549
    %v554 = vrcp.pop %v552
    %v555 = vmul.f32 %v544, %v553
    %v556 = vmul.f32 %v546, %v554
    %v557 = vpack.c.bf16 %v556, %v555
    %558 = vrot.lane.b32.xlu0 %v227, 48
    %v559 = vpop.permute.xlu0 %558
    %v562 = vsel %vm279, %v557, 0
    %564 = vmatprep.subr.bf16.mxu0 0
    %565 = vmatpush1.bf16.msra.mxu0 %v559
    %566 = vmatprep.subr.bf16.mxu0 0
    %567 = vmatpush1.bf16.msra.mxu0 0
    %568 = vmatprep.subr.bf16.mxu0 0
    %569 = vmatpush1.bf16.msra.mxu0 0
    %570 = vmatprep.subr.bf16.mxu0 0
    %571 = vmatpush1.bf16.msra.mxu0 0
    %572 = vmatprep.subr.bf16.mxu0 0
    %573 = vmatpush1.bf16.msra.mxu0 0
    %574 = vmatprep.subr.bf16.mxu0 0
    %575 = vmatpush1.bf16.msra.mxu0 0
    %576 = vmatprep.subr.bf16.mxu0 0
    %577 = vmatpush1.bf16.msra.mxu0 0
    %578 = vmatprep.subr.bf16.mxu0 0
    %579 = vmatpush1.bf16.msra.mxu0 0
    %580 = vmatprep.subr.bf16.mxu0 0
    %581 = vmatpush1.bf16.msra.mxu0 0
    %582 = vmatprep.subr.bf16.mxu0 0
    %583 = vmatpush1.bf16.msra.mxu0 0
    %584 = vmatprep.subr.bf16.mxu0 0
    %585 = vmatpush1.bf16.msra.mxu0 0
    %586 = vmatprep.subr.bf16.mxu0 0
    %587 = vmatpush1.bf16.msra.mxu0 0
    %588 = vmatprep.subr.bf16.mxu0 0
    %589 = vmatpush1.bf16.msra.mxu0 0
    %590 = vmatprep.subr.bf16.mxu0 0
    %591 = vmatpush1.bf16.msra.mxu0 0
    %592 = vmatprep.subr.bf16.mxu0 0
    %593 = vmatpush1.bf16.msra.mxu0 0
    %594 = vmatprep.subr.bf16.mxu0 0
    %595 = vmatpush1.bf16.msra.mxu0 0
    %596 = vmatprep.mubr.bf16.mxu0 0
    %597 = vmatmul.mubr.bf16.gmra.mrb[0].mxu0 %v562
    %v598 = vpop.f32.mrb[0].mxu0
    %v599 = vadd.f32 0.0, %v598
    %v600 = vpop.f32.mrb[0].mxu0
    %v601 = vpop.f32.mrb[0].mxu0
    %v602 = vadd.f32 0.0, %v601
    %v603 = vpop.f32.mrb[0].mxu0
    %604 = vdwg.mxu0
    %607 = vrot.lane.b32.xlu0 %v599, 16
    %v608 = vpop.permute.xlu0 %607
    %609 = vrot.lane.b32.xlu0 %v602, 16
    %v610 = vpop.permute.xlu0 %609
    %vm613 = vcmask 195712
    %614 = vst.msk [vmem:[#allocation2] sm:$0xff] %vm613, %v608
    %615 = vst.msk [vmem:[#allocation2 + $0x8] sm:$0xff] %vm613, %v610
    %616 = vrot.lane.b32.xlu0 %v227, 104
    %v617 = vpop.permute.xlu0 %616
    %618 = vrot.lane.b32.xlu0 %v227, 72
    %v619 = vpop.permute.xlu0 %618
    %v621 = vsel %vm231, %v617, 0
    %v624 = vsel %vm231, %v619, 0
    %626 = vmatprep.subr.bf16.mxu0 0
    %627 = vmatpush1.bf16.xpose.msra.mxu0 %v624
    %628 = vmatprep.subr.bf16.mxu0 0
    %629 = vmatpush1.bf16.xpose.msra.mxu0 0
    %630 = vmatprep.subr.bf16.mxu0 0
    %631 = vmatpush1.bf16.xpose.msra.mxu0 0
    %632 = vmatprep.subr.bf16.mxu0 0
    %633 = vmatpush1.bf16.xpose.msra.mxu0 0
    %634 = vmatprep.subr.bf16.mxu0 0
    %635 = vmatpush1.bf16.xpose.msra.mxu0 0
    %636 = vmatprep.subr.bf16.mxu0 0
    %637 = vmatpush1.bf16.xpose.msra.mxu0 0
    %638 = vmatprep.subr.bf16.mxu0 0
    %639 = vmatpush1.bf16.xpose.msra.mxu0 0
    %640 = vmatprep.subr.bf16.mxu0 0
    %641 = vmatpush1.bf16.xpose.msra.mxu0 0
    %642 = vmatprep.subr.bf16.mxu0 0
    %643 = vmatpush1.bf16.xpose.msra.mxu0 0
    %644 = vmatprep.subr.bf16.mxu0 0
    %645 = vmatpush1.bf16.xpose.msra.mxu0 0
    %646 = vmatprep.subr.bf16.mxu0 0
    %647 = vmatpush1.bf16.xpose.msra.mxu0 0
    %648 = vmatprep.subr.bf16.mxu0 0
    %649 = vmatpush1.bf16.xpose.msra.mxu0 0
    %650 = vmatprep.subr.bf16.mxu0 0
    %651 = vmatpush1.bf16.xpose.msra.mxu0 0
    %652 = vmatprep.subr.bf16.mxu0 0
    %653 = vmatpush1.bf16.xpose.msra.mxu0 0
    %654 = vmatprep.subr.bf16.mxu0 0
    %655 = vmatpush1.bf16.xpose.msra.mxu0 0
    %656 = vmatprep.subr.bf16.mxu0 0
    %657 = vmatpush1.bf16.xpose.msra.mxu0 0
    %658 = vmatprep.mubr.bf16.mxu0 0
    %659 = vmatmul.mubr.bf16.gmra.mrb[0].mxu0 %v621
    %v660 = vpop.f32.mrb[0].mxu0
    %v661 = vadd.f32 %v225, %v660
    %v662 = vpop.f32.mrb[0].mxu0
    %v663 = vpop.f32.mrb[0].mxu0
    %v664 = vadd.f32 %v226, %v663
    %v665 = vpop.f32.mrb[0].mxu0
    %666 = vdwg.mxu0
    %v667 = vsel %vm279, %v661, -inf
    %668 = vmax.xlane.f32.xlu0 %v667
    %v669 = vpop.xlane.xlu0 %668
    %v670 = vsel %vm279, %v664, -inf
    %671 = vmax.xlane.f32.xlu0 %v670
    %v672 = vpop.xlane.xlu0 %671
    %v673 = vsub.f32 %v661, %v669
    %v674 = vsub.f32 %v664, %v672
    %v675 = vmul.f32 %v673, 1.442695
    %v676 = vpow.pop %v675
    %v677 = vmul.f32 %v674, 1.442695
    %v678 = vpow.pop %v677
    %v679 = vsel %vm279, %v676, 0.0
    %680 = vadd.xlane.f32.xlu0 %v679
    %v681 = vpop.xlane.xlu0 %680
    %v682 = vsel %vm279, %v678, 0.0
    %683 = vadd.xlane.f32.xlu0 %v682
    %v684 = vpop.xlane.xlu0 %683
    %v685 = vrcp.pop %v681
    %v686 = vrcp.pop %v684
    %v687 = vmul.f32 %v676, %v685
    %v688 = vmul.f32 %v678, %v686
    %v689 = vpack.c.bf16 %v688, %v687
    %690 = vrot.lane.b32.xlu0 %v227, 40
    %v691 = vpop.permute.xlu0 %690
    %v694 = vsel %vm279, %v689, 0
    %696 = vmatprep.subr.bf16.mxu0 0
    %697 = vmatpush1.bf16.msra.mxu0 %v691
    %698 = vmatprep.subr.bf16.mxu0 0
    %699 = vmatpush1.bf16.msra.mxu0 0
    %700 = vmatprep.subr.bf16.mxu0 0
    %701 = vmatpush1.bf16.msra.mxu0 0
    %702 = vmatprep.subr.bf16.mxu0 0
    %703 = vmatpush1.bf16.msra.mxu0 0
    %704 = vmatprep.subr.bf16.mxu0 0
    %705 = vmatpush1.bf16.msra.mxu0 0
    %706 = vmatprep.subr.bf16.mxu0 0
    %707 = vmatpush1.bf16.msra.mxu0 0
    %708 = vmatprep.subr.bf16.mxu0 0
    %709 = vmatpush1.bf16.msra.mxu0 0
    %710 = vmatprep.subr.bf16.mxu0 0
    %711 = vmatpush1.bf16.msra.mxu0 0
    %712 = vmatprep.subr.bf16.mxu0 0
    %713 = vmatpush1.bf16.msra.mxu0 0
    %714 = vmatprep.subr.bf16.mxu0 0
    %715 = vmatpush1.bf16.msra.mxu0 0
    %716 = vmatprep.subr.bf16.mxu0 0
    %717 = vmatpush1.bf16.msra.mxu0 0
    %718 = vmatprep.subr.bf16.mxu0 0
    %719 = vmatpush1.bf16.msra.mxu0 0
    %720 = vmatprep.subr.bf16.mxu0 0
    %721 = vmatpush1.bf16.msra.mxu0 0
    %722 = vmatprep.subr.bf16.mxu0 0
    %723 = vmatpush1.bf16.msra.mxu0 0
    %724 = vmatprep.subr.bf16.mxu0 0
    %725 = vmatpush1.bf16.msra.mxu0 0
    %726 = vmatprep.subr.bf16.mxu0 0
    %727 = vmatpush1.bf16.msra.mxu0 0
    %728 = vmatprep.mubr.bf16.mxu0 0
    %729 = vmatmul.mubr.bf16.gmra.mrb[0].mxu0 %v694
    %v730 = vpop.f32.mrb[0].mxu0
    %v731 = vadd.f32 0.0, %v730
    %v732 = vpop.f32.mrb[0].mxu0
    %v733 = vpop.f32.mrb[0].mxu0
    %v734 = vadd.f32 0.0, %v733
    %v735 = vpop.f32.mrb[0].mxu0
    %736 = vdwg.mxu0
    %739 = vrot.lane.b32.xlu0 %v731, 24
    %v740 = vpop.permute.xlu0 %739
    %741 = vrot.lane.b32.xlu0 %v734, 24
    %v742 = vpop.permute.xlu0 %741
    %vm745 = vcmask 261312
    %746 = vst.msk [vmem:[#allocation2] sm:$0xff] %vm745, %v740
    %747 = vst.msk [vmem:[#allocation2 + $0x8] sm:$0xff] %vm745, %v742
    %v748 = vld [vmem:[#allocation2] sm:$0xff]
    %v749 = vld [vmem:[#allocation2 + $0x8] sm:$0xff]
    %v750 = vpack.c.bf16 %v749, %v748
    %v751 = vld [vmem:[#allocation6] sm:$0xf]
    %v752 = vld [vmem:[#allocation6 + $0x4] sm:$0xf]
    %v753 = vld [vmem:[#allocation6 + $0x8] sm:$0xf]
    %v754 = vld [vmem:[#allocation6 + $0xc] sm:$0xf]
    %v755 = vld [vmem:[#allocation8] sm:$0x1]
    %v757 = vlaneseq
    %v758 = vshrl.u32 %v757, 7
    %v759 = vsub.s32 0, %v758
    %v760 = vrot.slane %v755, %v759
    %v766 = vunpack.c.l.b16 %v751
    %v767 = vunpack.c.l.b16 %v752
    %v768 = vunpack.c.l.b16 %v753
    %v769 = vunpack.c.l.b16 %v754
    %v770 = vpack.c.b16 %v767, %v766
    %v771 = vpack.c.b16 %v769, %v768
    %v775 = vsel %vm111, %v750, 0
    %777 = vmatprep.subr.bf16.mxu0 0
    %778 = vmatpush1.bf16.msra.mxu0 %v770
    %779 = vmatprep.subr.bf16.mxu0 0
    %780 = vmatpush1.bf16.msra.mxu0 %v771
    %781 = vmatprep.subr.bf16.mxu0 0
    %782 = vmatpush1.bf16.msra.mxu0 0
    %783 = vmatprep.subr.bf16.mxu0 0
    %784 = vmatpush1.bf16.msra.mxu0 0
    %785 = vmatprep.subr.bf16.mxu0 0
    %786 = vmatpush1.bf16.msra.mxu0 0
    %787 = vmatprep.subr.bf16.mxu0 0
    %788 = vmatpush1.bf16.msra.mxu0 0
    %789 = vmatprep.subr.bf16.mxu0 0
    %790 = vmatpush1.bf16.msra.mxu0 0
    %791 = vmatprep.subr.bf16.mxu0 0
    %792 = vmatpush1.bf16.msra.mxu0 0
    %793 = vmatprep.subr.bf16.mxu0 0
    %794 = vmatpush1.bf16.msra.mxu0 0
    %795 = vmatprep.subr.bf16.mxu0 0
    %796 = vmatpush1.bf16.msra.mxu0 0
    %797 = vmatprep.subr.bf16.mxu0 0
    %798 = vmatpush1.bf16.msra.mxu0 0
    %799 = vmatprep.subr.bf16.mxu0 0
    %800 = vmatpush1.bf16.msra.mxu0 0
    %801 = vmatprep.subr.bf16.mxu0 0
    %802 = vmatpush1.bf16.msra.mxu0 0
    %803 = vmatprep.subr.bf16.mxu0 0
    %804 = vmatpush1.bf16.msra.mxu0 0
    %805 = vmatprep.subr.bf16.mxu0 0
    %806 = vmatpush1.bf16.msra.mxu0 0
    %807 = vmatprep.subr.bf16.mxu0 0
    %808 = vmatpush1.bf16.msra.mxu0 0
    %809 = vmatprep.mubr.bf16.mxu0 0
    %810 = vmatmul.mubr.bf16.gmra.mrb[0].mxu0 %v775
    %v811 = vpop.f32.mrb[0].mxu0
    %v812 = vadd.f32 %v760, %v811
    %v813 = vpop.f32.mrb[0].mxu0
    %v814 = vpop.f32.mrb[0].mxu0
    %v815 = vadd.f32 %v760, %v814
    %v816 = vpop.f32.mrb[0].mxu0
    %817 = vdwg.mxu0
    %v818 = vsel %vm111, %v812, 0.0
    %819 = vadd.xlane.f32.xlu0 %v818
    %v820 = vpop.xlane.xlu0 %819
    %v821 = vsel %vm111, %v815, 0.0
    %822 = vadd.xlane.f32.xlu0 %v821
    %v823 = vpop.xlane.xlu0 %822
    %v824 = vmul.f32 %v820, %v118
    %v825 = vmul.f32 %v823, %v118
    %v826 = vsub.f32 %v812, %v824
    %v827 = vsub.f32 %v815, %v825
    %v828 = vmul.f32 %v826, %v826
    %v829 = vmul.f32 %v827, %v827
    %v830 = vsel %vm111, %v828, 0.0
    %831 = vadd.xlane.f32.xlu0 %v830
    %v832 = vpop.xlane.xlu0 %831
    %v833 = vsel %vm111, %v829, 0.0
    %834 = vadd.xlane.f32.xlu0 %v833
    %v835 = vpop.xlane.xlu0 %834
    %v836 = vmul.f32 %v832, %v118
    %v837 = vmul.f32 %v835, %v118
    %v838 = vadd.f32 %v836, 1e-05
    %v839 = vadd.f32 %v837, 1e-05
    %v840 = vrsqrt.pop %v838
    %v841 = vrsqrt.pop %v839
    %v842 = vmul.f32 %v826, %v840
    %v843 = vmul.f32 %v827, %v841
    %v844 = vld [vmem:[#allocation9] sm:$0x1]
    %v846 = vlaneseq
    %v847 = vshrl.u32 %v846, 7
    %v848 = vsub.s32 0, %v847
    %v849 = vrot.slane %v844, %v848
    %v851 = vmul.f32 %v842, %v849
    %v852 = vmul.f32 %v843, %v849
    %v853 = vld [vmem:[#allocation11] sm:$0x1]
    %v855 = vlaneseq
    %v856 = vshrl.u32 %v855, 7
    %v857 = vsub.s32 0, %v856
    %v858 = vrot.slane %v853, %v857
    %v860 = vadd.f32 %v851, %v858
    %v861 = vadd.f32 %v852, %v858
    %v862 = vpack.c.bf16 %v861, %v860
    %v863 = vld [vmem:[%s10] sm:$0xf]
    %v864 = vld [vmem:[%s10 + $0x4] sm:$0xf]
    %v865 = vld [vmem:[%s10 + $0x8] sm:$0xf]
    %v866 = vld [vmem:[%s10 + $0xc] sm:$0xf]
    %v867 = vld [vmem:[%s11] sm:$0x1]
    %v869 = vlaneseq
    %v870 = vshrl.u32 %v869, 7
    %v871 = vsub.s32 0, %v870
    %v872 = vrot.slane %v867, %v871
    %v878 = vunpack.c.l.b16 %v863
    %v879 = vunpack.c.l.b16 %v864
    %v880 = vunpack.c.l.b16 %v865
    %v881 = vunpack.c.l.b16 %v866
    %v882 = vpack.c.b16 %v879, %v878
    %v883 = vpack.c.b16 %v881, %v880
    %v887 = vsel %vm111, %v862, 0
    %889 = vmatprep.subr.bf16.mxu0 0
    %890 = vmatpush1.bf16.msra.mxu0 %v882
    %891 = vmatprep.subr.bf16.mxu0 0
    %892 = vmatpush1.bf16.msra.mxu0 %v883
    %893 = vmatprep.subr.bf16.mxu0 0
    %894 = vmatpush1.bf16.msra.mxu0 0
    %895 = vmatprep.subr.bf16.mxu0 0
    %896 = vmatpush1.bf16.msra.mxu0 0
    %897 = vmatprep.subr.bf16.mxu0 0
    %898 = vmatpush1.bf16.msra.mxu0 0
    %899 = vmatprep.subr.bf16.mxu0 0
    %900 = vmatpush1.bf16.msra.mxu0 0
    %901 = vmatprep.subr.bf16.mxu0 0
    %902 = vmatpush1.bf16.msra.mxu0 0
    %903 = vmatprep.subr.bf16.mxu0 0
    %904 = vmatpush1.bf16.msra.mxu0 0
    %905 = vmatprep.subr.bf16.mxu0 0
    %906 = vmatpush1.bf16.msra.mxu0 0
    %907 = vmatprep.subr.bf16.mxu0 0
    %908 = vmatpush1.bf16.msra.mxu0 0
    %909 = vmatprep.subr.bf16.mxu0 0
    %910 = vmatpush1.bf16.msra.mxu0 0
    %911 = vmatprep.subr.bf16.mxu0 0
    %912 = vmatpush1.bf16.msra.mxu0 0
    %913 = vmatprep.subr.bf16.mxu0 0
    %914 = vmatpush1.bf16.msra.mxu0 0
    %915 = vmatprep.subr.bf16.mxu0 0
    %916 = vmatpush1.bf16.msra.mxu0 0
    %917 = vmatprep.subr.bf16.mxu0 0
    %918 = vmatpush1.bf16.msra.mxu0 0
    %919 = vmatprep.subr.bf16.mxu0 0
    %920 = vmatpush1.bf16.msra.mxu0 0
    %921 = vmatprep.mubr.bf16.mxu0 0
    %922 = vmatmul.mubr.bf16.gmra.mrb[0].mxu0 %v887
    %v923 = vpop.f32.mrb[0].mxu0
    %v924 = vadd.f32 %v872, %v923
    %v925 = vpop.f32.mrb[0].mxu0
    %v926 = vpop.f32.mrb[0].mxu0
    %v927 = vadd.f32 %v872, %v926
    %v928 = vpop.f32.mrb[0].mxu0
    %929 = vdwg.mxu0
    %v930 = vmax.f32 %v924, 0.0
    %v931 = vmax.f32 %v927, 0.0
    %v932 = vpack.c.bf16 %v931, %v930
    %v933 = vld [vmem:[%s12] sm:$0xf]
    %v934 = vld [vmem:[%s12 + $0x4] sm:$0xf]
    %v935 = vld [vmem:[%s12 + $0x8] sm:$0xf]
    %v936 = vld [vmem:[%s12 + $0xc] sm:$0xf]
    %v937 = vld [vmem:[%s12 + $0x10] sm:$0xf]
    %v938 = vld [vmem:[%s12 + $0x14] sm:$0xf]
    %v939 = vld [vmem:[%s12 + $0x18] sm:$0xf]
    %v940 = vld [vmem:[%s12 + $0x1c] sm:$0xf]
    %v941 = vld [vmem:[%s13] sm:$0x1]
    %v943 = vlaneseq
    %v944 = vshrl.u32 %v943, 7
    %v945 = vsub.s32 0, %v944
    %v946 = vrot.slane %v941, %v945
    %v956 = vunpack.c.l.b16 %v933
    %v957 = vunpack.c.l.b16 %v934
    %v958 = vunpack.c.l.b16 %v935
    %v959 = vunpack.c.l.b16 %v936
    %v960 = vunpack.c.l.b16 %v937
    %v961 = vunpack.c.l.b16 %v938
    %v962 = vunpack.c.l.b16 %v939
    %v963 = vunpack.c.l.b16 %v940
    %v964 = vpack.c.b16 %v957, %v956
    %v965 = vpack.c.b16 %v959, %v958
    %v966 = vpack.c.b16 %v961, %v960
    %v967 = vpack.c.b16 %v963, %v962
    %vm972 = vcmask 523264
    %v974 = vsel %vm972, %v932, 0
    %976 = vmatprep.subr.bf16.mxu0 0
    %977 = vmatpush1.bf16.msra.mxu0 %v964
    %978 = vmatprep.subr.bf16.mxu0 0
    %979 = vmatpush1.bf16.msra.mxu0 %v965
    %980 = vmatprep.subr.bf16.mxu0 0
    %981 = vmatpush1.bf16.msra.mxu0 %v966
    %982 = vmatprep.subr.bf16.mxu0 0
    %983 = vmatpush1.bf16.msra.mxu0 %v967
    %984 = vmatprep.subr.bf16.mxu0 0
    %985 = vmatpush1.bf16.msra.mxu0 0
    %986 = vmatprep.subr.bf16.mxu0 0
    %987 = vmatpush1.bf16.msra.mxu0 0
    %988 = vmatprep.subr.bf16.mxu0 0
    %989 = vmatpush1.bf16.msra.mxu0 0
    %990 = vmatprep.subr.bf16.mxu0 0
    %991 = vmatpush1.bf16.msra.mxu0 0
    %992 = vmatprep.subr.bf16.mxu0 0
    %993 = vmatpush1.bf16.msra.mxu0 0
    %994 = vmatprep.subr.bf16.mxu0 0
    %995 = vmatpush1.bf16.msra.mxu0 0
    %996 = vmatprep.subr.bf16.mxu0 0
    %997 = vmatpush1.bf16.msra.mxu0 0
    %998 = vmatprep.subr.bf16.mxu0 0
    %999 = vmatpush1.bf16.msra.mxu0 0
    %1000 = vmatprep.subr.bf16.mxu0 0
    %1001 = vmatpush1.bf16.msra.mxu0 0
    %1002 = vmatprep.subr.bf16.mxu0 0
    %1003 = vmatpush1.bf16.msra.mxu0 0
    %1004 = vmatprep.subr.bf16.mxu0 0
    %1005 = vmatpush1.bf16.msra.mxu0 0
    %1006 = vmatprep.subr.bf16.mxu0 0
    %1007 = vmatpush1.bf16.msra.mxu0 0
    %1008 = vmatprep.mubr.bf16.mxu0 0
    %1009 = vmatmul.mubr.bf16.gmra.mrb[0].mxu0 %v974
    %v1010 = vpop.f32.mrb[0].mxu0
    %v1011 = vadd.f32 %v946, %v1010
    %v1012 = vpop.f32.mrb[0].mxu0
    %v1013 = vpop.f32.mrb[0].mxu0
    %v1014 = vadd.f32 %v946, %v1013
    %v1015 = vpop.f32.mrb[0].mxu0
    %1016 = vdwg.mxu0
    %1017 = vst.msk [vmem:[#allocation12] sm:$0xff] %vm111, %v1011
    %1018 = vst.msk [vmem:[#allocation12 + $0x8] sm:$0xff] %vm111, %v1014
    // Predicated region
    $region78: #{tpu_custom_call.1} parent=1 // pred_check
      _
    $region79: #{tpu_custom_call.1} parent=1 // pred_check_branch
      %1020 = sbr.rel (0) target = $region81
    $region80: #{tpu_custom_call.1} parent=1 // pred_region
      %s1022 = ssub.s32 256, 256
      %1023 = vsyncadd [#allocation5], %s1022
      %s1024 = sshll.u32 [#allocation12], 4
      %s1025 = int_to_ptr.vmem [resolvable:$true] %s1024
      %1030 = dma.vmem_to_hbm [thread:$0]  %s1025, 256, %s14, [#allocation5], 128, 128, 8
    $region81: #{tpu_custom_call.1} parent=1 // pred_fallthru
      _
    // Predicated region
    $region82: #{tpu_custom_call.1} parent=1 // pred_check
      _
    $region83: #{tpu_custom_call.1} parent=1 // pred_check_branch
      %1032 = sbr.rel (0) target = $region85
    $region84: #{tpu_custom_call.1} parent=1 // pred_region
      %1033 = dma.done [#allocation5], 256
    $region85: #{tpu_custom_call.1} parent=1 // pred_fallthru
      _
    %1034 = vsyncpa [#allocation4], 1
    %1035 = vsyncpa [#allocation7], 1
    %1036 = vsyncpa [#allocation10], 1
    %1037 = vsyncpa [#allocation5], 1

</llo_original>
